<compile_context>
chip_gen: v7x
topology: tpu7x:2x2x1
jax: 0.10.0
libtpu: 0.0.40
codegen_flags: <defaults>
</compile_context>

<pallas_src>
import functools

import jax
import jax.numpy as jnp
from jax.experimental import pallas as pl
from jax.experimental.pallas import tpu as pltpu

# Conservative per-kernel VMEM budgets: the working-set guard stays below the smallest
# relevant ceiling (v7x: 64 MiB physical); the scoped limit is raised explicitly above
# the v5e/v6e defaults (16 / 32 MiB).
_VMEM_BUDGET_BYTES = 36 * 1024 * 1024
_VMEM_LIMIT_BYTES = 48 * 1024 * 1024


def _round_up(x, m):
    return -(-x // m) * m


# -----------------------------------------------------------------------------------
# Fast path: one-hot x (block-diagonal) table on the MXU, lane-dense packed output.
# -----------------------------------------------------------------------------------
def _onehot_embed_kernel(ids_ref, emb_ref, out_ref, *, exact_f32):
    # ids_ref : VMEM (tile_p, P) int32 -- P packed tokens per row, slot p pre-shifted by p*V
    # emb_ref : VMEM (P*V, P*D)        -- block-diagonal expanded table (== table when P == 1)
    # out_ref : VMEM (tile_p, P*D)     -- lane-dense output block (P*D is a multiple of 128)
    tile_p, num_slots = ids_ref.shape
    pv = emb_ref.shape[0]

    ids = ids_ref[...]
    col = jax.lax.broadcasted_iota(jnp.int32, (tile_p, pv), 1)

    # Boolean one-hot built with OR and a single cast at the end (half the VPU passes and
    # live intermediate width vs. accumulating f32 adds). Shifted ids land in disjoint
    # [p*V, (p+1)*V) bands, so OR-ing the per-slot masks yields an exact one-hot.
    onehot = ids[:, 0:1] == col
    for p in range(1, num_slots):  # trace-time unroll; P is small (1..4)
        onehot = jnp.logical_or(onehot, ids[:, p : p + 1] == col)
    onehot = onehot.astype(emb_ref.dtype)

    # One MXU matmul gathers the whole tile. bf16 tables run at native MXU rate (exact
    # select); f32 tables request HIGHEST precision so no mantissa bits are lost.
    precision = (
        jax.lax.Precision.HIGHEST
        if exact_f32 and emb_ref.dtype == jnp.float32
        else None
    )
    out_ref[...] = jnp.dot(
        onehot,
        emb_ref[...],
        preferred_element_type=jnp.float32,
        precision=precision,
    ).astype(out_ref.dtype)


def _onehot_working_set_bytes(tile_p, P, V, D, itemsize):
    table = (P * V) * (P * D) * itemsize        # resident table, single-buffered
    ids = 2 * tile_p * P * 4                    # double-buffered ids tile
    out = 2 * tile_p * (P * D) * itemsize       # double-buffered output tile
    onehot = tile_p * (P * V) * (itemsize + 1)  # bool mask + cast copy (rough)
    return table + ids + out + onehot


def _onehot_embedding(ids, emb_table, P, target_tile_tokens):
    B, S = ids.shape
    V, D = emb_table.shape
    dtype = emb_table.dtype
    itemsize = jnp.dtype(dtype).itemsize
    N = B * S

    # ---- tile sizing (rows of P-packed tokens; multiple of 8 sublanes) -----------------
    rows_needed = -(-N // P)
    tile_p = max(8, (target_tile_tokens // P) // 8 * 8)
    if rows_needed >= 16:
        # Aim for at least 2 grid steps so the "parallel" axis can feed both v7x TCs.
        tile_p = min(tile_p, _round_up(_round_up(rows_needed, 8) // 2, 8))
    else:
        tile_p = min(tile_p, _round_up(rows_needed, 8))
    while tile_p > 8 and _onehot_working_set_bytes(tile_p, P, V, D, itemsize) > _VMEM_BUDGET_BYTES:
        tile_p = max(8, (tile_p // 2) // 8 * 8)
    if _onehot_working_set_bytes(tile_p, P, V, D, itemsize) > _VMEM_BUDGET_BYTES:
        return None  # table itself too big for this path; caller falls back to a gather

    n_tiles = -(-rows_needed // tile_p)
    rows_pad = n_tiles * tile_p
    N_pad = rows_pad * P

    # ---- operand prep -------------------------------------------------------------------
    # Clamp (torch raises on OOB; we clamp -- documented deviation), pad the ragged tail
    # with id 0 (sliced off after the kernel), pack P tokens per row and pre-shift slot p
    # by p*V so a single (tile_p, P*V) one-hot addresses a block-diagonal table.
    flat = jnp.clip(ids.reshape(-1).astype(jnp.int32), 0, V - 1)
    if N_pad != N:
        flat = jnp.pad(flat, (0, N_pad - N))
    ids_packed = flat.reshape(rows_pad, P) + jnp.arange(P, dtype=jnp.int32)[None, :] * V

    # Block-diagonal table expansion (P*V, P*D); identity when P == 1. Kept VMEM-resident
    # (constant index_map -> loaded once) and single-buffered below. With V=64, P=4 the
    # contraction depth is 256: two clean 128-deep passes on v5e, one on v6e/v7x.
    emb_bd = emb_table if P == 1 else jnp.kron(jnp.eye(P, dtype=dtype), emb_table)

    cost = pl.CostEstimate(
        flops=2 * rows_pad * (P * V) * (P * D),
        transcendentals=0,
        bytes_accessed=(
            rows_pad * P * 4
            + (P * V) * (P * D) * itemsize
            + rows_pad * (P * D) * itemsize
        ),
    )

    def _call(pipeline_mode, exact_f32):
        table_kwargs = {} if pipeline_mode is None else {"pipeline_mode": pipeline_mode}
        return pl.pallas_call(
            functools.partial(_onehot_embed_kernel, exact_f32=exact_f32),
            out_shape=jax.ShapeDtypeStruct((rows_pad, P * D), dtype),
            grid=(n_tiles,),
            in_specs=[
                pl.BlockSpec((tile_p, P), lambda i: (i, 0)),                      # ids tile
                pl.BlockSpec((P * V, P * D), lambda i: (0, 0), **table_kwargs),   # resident table
            ],
            out_specs=pl.BlockSpec((tile_p, P * D), lambda i: (i, 0)),            # lane-dense out
            compiler_params=pltpu.CompilerParams(
                dimension_semantics=("parallel",),  # independent tiles -> megacore-shardable
                vmem_limit_bytes=_VMEM_LIMIT_BYTES,
            ),
            cost_estimate=cost,
        )(ids_packed, emb_bd)

    # Preferred config: single-buffered resident table + exact-f32 dot. Retry with more
    # conservative configs if this jax build rejects either knob.
    out_packed = None
    last_err = None
    for pipeline_mode, exact_f32 in ((pl.Buffered(1), True), (None, True), (None, False)):
        try:
            out_packed = _call(pipeline_mode, exact_f32)
            break
        except Exception as e:  # retry with a plainer config
            last_err = e
    if out_packed is None:
        raise last_err

    out_flat = out_packed.reshape(N_pad, D)
    if N_pad != N:
        out_flat = out_flat[:N]  # only pay the extra copy when padding was added
    return out_flat.reshape(B, S, D)


# -----------------------------------------------------------------------------------
# Fallback path: VMEM-resident table + per-row dynamic-index copies (used when the vocab
# is too large for the one-hot/MXU trick but the raw table still fits VMEM).
# -----------------------------------------------------------------------------------
def _rowcopy_gather_kernel(ids_ref, emb_ref, out_ref):
    # ids_ref : SMEM (tile,) int32 ; emb_ref : VMEM (V, D) ; out_ref : VMEM (tile, D)
    def body(t, carry):
        out_ref[t, :] = emb_ref[ids_ref[t], :]
        return carry

    jax.lax.fori_loop(0, out_ref.shape[0], body, 0)


def _rowcopy_embedding(ids, emb_table):
    B, S = ids.shape
    V, D = emb_table.shape
    N = B * S
    tile = max(8, min(512, _round_up(N, 8)))
    n_tiles = -(-N // tile)
    N_pad = n_tiles * tile

    flat = jnp.clip(ids.reshape(-1).astype(jnp.int32), 0, V - 1)
    if N_pad != N:
        flat = jnp.pad(flat, (0, N_pad - N))

    out = pl.pallas_call(
        _rowcopy_gather_kernel,
        out_shape=jax.ShapeDtypeStruct((N_pad, D), emb_table.dtype),
        grid=(n_tiles,),
        in_specs=[
            pl.BlockSpec((tile,), lambda i: (i,), memory_space=pltpu.MemorySpace.SMEM),
            pl.BlockSpec((V, D), lambda i: (0, 0)),
        ],
        out_specs=pl.BlockSpec((tile, D), lambda i: (i, 0)),
        compiler_params=pltpu.CompilerParams(
            dimension_semantics=("arbitrary",),
            vmem_limit_bytes=_VMEM_LIMIT_BYTES,
        ),
    )(flat, emb_table)
    if N_pad != N:
        out = out[:N]
    return out.reshape(B, S, D)


# -----------------------------------------------------------------------------------
# Public entry point (== torch TokenEmbedding.forward).
# -----------------------------------------------------------------------------------
def token_embedding(ids, emb_table, *, target_tile_tokens=4096):
    """ids: (B, S) int -> (B, S, D) gathered rows (== torch.nn.Embedding forward)."""
    V, D = emb_table.shape
    itemsize = jnp.dtype(emb_table.dtype).itemsize

    # Lane-packing factor: P tokens per output row so the kernel writes 128-multiple
    # lane-dense blocks (unmasked vst). Falls back to 1 when D does not divide 128.
    P = 128 // D if (D < 128 and 128 % D == 0) else 1

    # The kron/one-hot MXU path costs P*V MACs per token and P^2 x table VMEM, so it is
    # gated on small vocabularies (where a bare K=V, N=D matmul would badly underfill the
    # MXU anyway); larger tables use a gather instead.
    if V <= 1024 and P * V <= 2048:
        out = _onehot_embedding(ids, emb_table, P, target_tile_tokens)
        if out is not None:
            return out

    if 2 * V * D * itemsize <= _VMEM_BUDGET_BYTES:
        return _rowcopy_embedding(ids, emb_table)

    # TODO(synk): HBM-resident table with scalar-prefetch-driven, double-buffered per-row
    # DMA gathers for production-scale vocabularies; plain XLA gather until then.
    return jnp.take(emb_table, jnp.clip(ids, 0, V - 1), axis=0)


if __name__ == "__main__":
    # Small shapes consistent with the module: batch=2, seq=8, vocab=64, d_model=32.
    vocab_size, d_model = 64, 32
    B, S = 2, 8

    key = jax.random.PRNGKey(0)
    k_emb, k_ids = jax.random.split(key)

    emb_table = jax.random.normal(k_emb, (vocab_size, d_model), dtype=jnp.float32)
    ids = jax.random.randint(k_ids, (B, S), 0, vocab_size, dtype=jnp.int32)

    out = jax.block_until_ready(token_embedding(ids, emb_table))

    # Reference check against a plain JAX gather.
    ref = jnp.take(emb_table, ids, axis=0)
    assert out.shape == (B, S, d_model)
    assert jnp.allclose(out, ref), "Pallas embedding gather mismatch vs reference"

    print("KERNEL_OK")
</pallas_src>

<mosaic_0001>
module attributes {stable_mosaic.version = 11 : i64} {
  func.func @_onehot_embed_kernel(%arg0: i32, %arg1: memref<8x4xi32, #tpu.memory_space<vmem>>, %arg2: memref<256x128xf32, #tpu.memory_space<vmem>>, %arg3: memref<8x128xf32, #tpu.memory_space<vmem>>) attributes {dimension_semantics = [#tpu.dimension_semantics<parallel>], iteration_bounds = array<i64: 1>, scalar_prefetch = 0 : i64, scratch_operands = 0 : i64, tpu.core_type = #tpu.core_type<tc>, window_params = [{transform_indices = @transform_0, window_bounds = array<i64: 8, 4>}, {pipeline_mode = #tpu.pipeline_mode<synchronous>, transform_indices = @transform_1, window_bounds = array<i64: 256, 128>}, {transform_indices = @transform_2, window_bounds = array<i64: 8, 128>}]} {
    %c0 = arith.constant 0 : index
    %c0_0 = arith.constant 0 : index
    %0 = vector.load %arg1[%c0, %c0_0] : memref<8x4xi32, #tpu.memory_space<vmem>>, vector<8x4xi32>
    %1 = tpu.iota {dimensions = array<i32: 1>} : vector<8x256xi32>
    %2 = vector.extract_strided_slice %0 {offsets = [0, 0], sizes = [8, 1], strides = [1, 1]} : vector<8x4xi32> to vector<8x1xi32>
    %3 = vector.broadcast %2 : vector<8x1xi32> to vector<8x256xi32>
    %4 = arith.cmpi eq, %3, %1 : vector<8x256xi32>
    %5 = vector.extract_strided_slice %0 {offsets = [0, 1], sizes = [8, 1], strides = [1, 1]} : vector<8x4xi32> to vector<8x1xi32>
    %6 = vector.broadcast %5 : vector<8x1xi32> to vector<8x256xi32>
    %7 = arith.cmpi eq, %6, %1 : vector<8x256xi32>
    %8 = arith.ori %4, %7 : vector<8x256xi1>
    %9 = vector.extract_strided_slice %0 {offsets = [0, 2], sizes = [8, 1], strides = [1, 1]} : vector<8x4xi32> to vector<8x1xi32>
    %10 = vector.broadcast %9 : vector<8x1xi32> to vector<8x256xi32>
    %11 = arith.cmpi eq, %10, %1 : vector<8x256xi32>
    %12 = arith.ori %8, %11 : vector<8x256xi1>
    %13 = vector.extract_strided_slice %0 {offsets = [0, 3], sizes = [8, 1], strides = [1, 1]} : vector<8x4xi32> to vector<8x1xi32>
    %14 = vector.broadcast %13 : vector<8x1xi32> to vector<8x256xi32>
    %15 = arith.cmpi eq, %14, %1 : vector<8x256xi32>
    %16 = arith.ori %12, %15 : vector<8x256xi1>
    %17 = arith.extui %16 : vector<8x256xi1> to vector<8x256xi32>
    %18 = arith.sitofp %17 : vector<8x256xi32> to vector<8x256xf32>
    %c0_1 = arith.constant 0 : index
    %c0_2 = arith.constant 0 : index
    %19 = vector.load %arg2[%c0_1, %c0_2] : memref<256x128xf32, #tpu.memory_space<vmem>>, vector<256x128xf32>
    %cst = arith.constant dense<0.000000e+00> : vector<8x128xf32>
    %20 = tpu.matmul %18, %19, %cst {dimension_numbers = #tpu.dot_dimension_numbers<[1], [0], [0], [1], [0, 0, 1, 1], [], []>, precision = #tpu.contract_precision<fp32>} : vector<8x256xf32>, vector<256x128xf32>, vector<8x128xf32> -> vector<8x128xf32>
    %c0_3 = arith.constant 0 : index
    %c0_4 = arith.constant 0 : index
    %21 = vector.load %arg3[%c0_3, %c0_4] : memref<8x128xf32, #tpu.memory_space<vmem>>, vector<8x128xf32>
    tpu.vector_store %arg3[%c0_3, %c0_4], %20 {strides = array<i32>} : memref<8x128xf32, #tpu.memory_space<vmem>>, vector<8x128xf32>,
    return
  }
  func.func @transform_0(%arg0: i32) -> (i32, i32) {
    %c0_i32 = arith.constant 0 : i32
    %c0_i32_0 = arith.constant 0 : i32
    return %arg0, %c0_i32 : i32, i32
  }
  func.func @transform_1(%arg0: i32) -> (i32, i32) {
    %c0_i32 = arith.constant 0 : i32
    %c0_i32_0 = arith.constant 0 : i32
    %c0_i32_1 = arith.constant 0 : i32
    return %c0_i32, %c0_i32_0 : i32, i32
  }
  func.func @transform_2(%arg0: i32) -> (i32, i32) {
    %c0_i32 = arith.constant 0 : i32
    %c0_i32_0 = arith.constant 0 : i32
    return %arg0, %c0_i32 : i32, i32
  }
}

module attributes {stable_mosaic.version = 11 : i64} {
  func.func @_onehot_embed_kernel(%arg0: i32, %arg1: memref<8x4xi32, #tpu.memory_space<vmem>>, %arg2: memref<256x128xf32, #tpu.memory_space<vmem>>, %arg3: memref<8x128xf32, #tpu.memory_space<vmem>>) attributes {dimension_semantics = [#tpu.dimension_semantics<parallel>], iteration_bounds = array<i64: 1>, scalar_prefetch = 0 : i64, scratch_operands = 0 : i64, tpu.core_type = #tpu.core_type<tc>, window_params = [{transform_indices = @transform_0, window_bounds = array<i64: 8, 4>}, {pipeline_mode = #tpu.pipeline_mode<synchronous>, transform_indices = @transform_1, window_bounds = array<i64: 256, 128>}, {transform_indices = @transform_2, window_bounds = array<i64: 8, 128>}]} {
    %c0 = arith.constant 0 : index
    %c0_0 = arith.constant 0 : index
    %0 = vector.load %arg1[%c0, %c0_0] : memref<8x4xi32, #tpu.memory_space<vmem>>, vector<8x4xi32>
    %1 = tpu.iota {dimensions = array<i32: 1>} : vector<8x256xi32>
    %2 = vector.extract_strided_slice %0 {offsets = [0, 0], sizes = [8, 1], strides = [1, 1]} : vector<8x4xi32> to vector<8x1xi32>
    %3 = vector.broadcast %2 : vector<8x1xi32> to vector<8x256xi32>
    %4 = arith.cmpi eq, %3, %1 : vector<8x256xi32>
    %5 = vector.extract_strided_slice %0 {offsets = [0, 1], sizes = [8, 1], strides = [1, 1]} : vector<8x4xi32> to vector<8x1xi32>
    %6 = vector.broadcast %5 : vector<8x1xi32> to vector<8x256xi32>
    %7 = arith.cmpi eq, %6, %1 : vector<8x256xi32>
    %8 = arith.ori %4, %7 : vector<8x256xi1>
    %9 = vector.extract_strided_slice %0 {offsets = [0, 2], sizes = [8, 1], strides = [1, 1]} : vector<8x4xi32> to vector<8x1xi32>
    %10 = vector.broadcast %9 : vector<8x1xi32> to vector<8x256xi32>
    %11 = arith.cmpi eq, %10, %1 : vector<8x256xi32>
    %12 = arith.ori %8, %11 : vector<8x256xi1>
    %13 = vector.extract_strided_slice %0 {offsets = [0, 3], sizes = [8, 1], strides = [1, 1]} : vector<8x4xi32> to vector<8x1xi32>
    %14 = vector.broadcast %13 : vector<8x1xi32> to vector<8x256xi32>
    %15 = arith.cmpi eq, %14, %1 : vector<8x256xi32>
    %16 = arith.ori %12, %15 : vector<8x256xi1>
    %17 = arith.extui %16 : vector<8x256xi1> to vector<8x256xi32>
    %18 = arith.sitofp %17 : vector<8x256xi32> to vector<8x256xf32>
    %c0_1 = arith.constant 0 : index
    %c0_2 = arith.constant 0 : index
    %19 = vector.load %arg2[%c0_1, %c0_2] : memref<256x128xf32, #tpu.memory_space<vmem>>, vector<256x128xf32>
    %cst = arith.constant dense<0.000000e+00> : vector<8x128xf32>
    %20 = tpu.matmul %18, %19, %cst {dimension_numbers = #tpu.dot_dimension_numbers<[1], [0], [0], [1], [0, 0, 1, 1], [], []>, precision = #tpu.contract_precision<fp32>} : vector<8x256xf32>, vector<256x128xf32>, vector<8x128xf32> -> vector<8x128xf32>
    %c0_3 = arith.constant 0 : index
    %c0_4 = arith.constant 0 : index
    %21 = vector.load %arg3[%c0_3, %c0_4] : memref<8x128xf32, #tpu.memory_space<vmem>>, vector<8x128xf32>
    tpu.vector_store %arg3[%c0_3, %c0_4], %20 {strides = array<i32>} : memref<8x128xf32, #tpu.memory_space<vmem>>, vector<8x128xf32>,
    return
  }
  func.func @transform_0(%arg0: i32) -> (i32, i32) {
    %c0_i32 = arith.constant 0 : i32
    %c0_i32_0 = arith.constant 0 : i32
    return %arg0, %c0_i32 : i32, i32
  }
  func.func @transform_1(%arg0: i32) -> (i32, i32) {
    %c0_i32 = arith.constant 0 : i32
    %c0_i32_0 = arith.constant 0 : i32
    %c0_i32_1 = arith.constant 0 : i32
    return %c0_i32, %c0_i32_0 : i32, i32
  }
  func.func @transform_2(%arg0: i32) -> (i32, i32) {
    %c0_i32 = arith.constant 0 : i32
    %c0_i32_0 = arith.constant 0 : i32
    return %arg0, %c0_i32 : i32, i32
  }
}

module attributes {stable_mosaic.version = 11 : i64} {
  func.func @_onehot_embed_kernel(%arg0: i32, %arg1: memref<8x4xi32, #tpu.memory_space<vmem>>, %arg2: memref<256x128xf32, #tpu.memory_space<vmem>>, %arg3: memref<8x128xf32, #tpu.memory_space<vmem>>) attributes {dimension_semantics = [#tpu.dimension_semantics<parallel>], iteration_bounds = array<i64: 1>, scalar_prefetch = 0 : i64, scratch_operands = 0 : i64, tpu.core_type = #tpu.core_type<tc>, window_params = [{transform_indices = @transform_0, window_bounds = array<i64: 8, 4>}, {pipeline_mode = #tpu.pipeline_mode<synchronous>, transform_indices = @transform_1, window_bounds = array<i64: 256, 128>}, {transform_indices = @transform_2, window_bounds = array<i64: 8, 128>}]} {
    %c0 = arith.constant 0 : index
    %c0_0 = arith.constant 0 : index
    %0 = vector.load %arg1[%c0, %c0_0] : memref<8x4xi32, #tpu.memory_space<vmem>>, vector<8x4xi32>
    %1 = tpu.iota {dimensions = array<i32: 1>} : vector<8x256xi32>
    %2 = vector.extract_strided_slice %0 {offsets = [0, 0], sizes = [8, 1], strides = [1, 1]} : vector<8x4xi32> to vector<8x1xi32>
    %3 = vector.broadcast %2 : vector<8x1xi32> to vector<8x256xi32>
    %4 = arith.cmpi eq, %3, %1 : vector<8x256xi32>
    %5 = vector.extract_strided_slice %0 {offsets = [0, 1], sizes = [8, 1], strides = [1, 1]} : vector<8x4xi32> to vector<8x1xi32>
    %6 = vector.broadcast %5 : vector<8x1xi32> to vector<8x256xi32>
    %7 = arith.cmpi eq, %6, %1 : vector<8x256xi32>
    %8 = arith.ori %4, %7 : vector<8x256xi1>
    %9 = vector.extract_strided_slice %0 {offsets = [0, 2], sizes = [8, 1], strides = [1, 1]} : vector<8x4xi32> to vector<8x1xi32>
    %10 = vector.broadcast %9 : vector<8x1xi32> to vector<8x256xi32>
    %11 = arith.cmpi eq, %10, %1 : vector<8x256xi32>
    %12 = arith.ori %8, %11 : vector<8x256xi1>
    %13 = vector.extract_strided_slice %0 {offsets = [0, 3], sizes = [8, 1], strides = [1, 1]} : vector<8x4xi32> to vector<8x1xi32>
    %14 = vector.broadcast %13 : vector<8x1xi32> to vector<8x256xi32>
    %15 = arith.cmpi eq, %14, %1 : vector<8x256xi32>
    %16 = arith.ori %12, %15 : vector<8x256xi1>
    %17 = arith.extui %16 : vector<8x256xi1> to vector<8x256xi32>
    %18 = arith.sitofp %17 : vector<8x256xi32> to vector<8x256xf32>
    %c0_1 = arith.constant 0 : index
    %c0_2 = arith.constant 0 : index
    %19 = vector.load %arg2[%c0_1, %c0_2] : memref<256x128xf32, #tpu.memory_space<vmem>>, vector<256x128xf32>
    %cst = arith.constant dense<0.000000e+00> : vector<8x128xf32>
    %20 = tpu.matmul %18, %19, %cst {dimension_numbers = #tpu.dot_dimension_numbers<[1], [0], [0], [1], [0, 0, 1, 1], [], []>} : vector<8x256xf32>, vector<256x128xf32>, vector<8x128xf32> -> vector<8x128xf32>
    %c0_3 = arith.constant 0 : index
    %c0_4 = arith.constant 0 : index
    %21 = vector.load %arg3[%c0_3, %c0_4] : memref<8x128xf32, #tpu.memory_space<vmem>>, vector<8x128xf32>
    tpu.vector_store %arg3[%c0_3, %c0_4], %20 {strides = array<i32>} : memref<8x128xf32, #tpu.memory_space<vmem>>, vector<8x128xf32>,
    return
  }
  func.func @transform_0(%arg0: i32) -> (i32, i32) {
    %c0_i32 = arith.constant 0 : i32
    %c0_i32_0 = arith.constant 0 : i32
    return %arg0, %c0_i32 : i32, i32
  }
  func.func @transform_1(%arg0: i32) -> (i32, i32) {
    %c0_i32 = arith.constant 0 : i32
    %c0_i32_0 = arith.constant 0 : i32
    %c0_i32_1 = arith.constant 0 : i32
    return %c0_i32, %c0_i32_0 : i32, i32
  }
  func.func @transform_2(%arg0: i32) -> (i32, i32) {
    %c0_i32 = arith.constant 0 : i32
    %c0_i32_0 = arith.constant 0 : i32
    return %arg0, %c0_i32 : i32, i32
  }
}

</mosaic_0001>

<llo_original>
// kernel: tpu_custom_call.1
$region0: #{tpu_custom_call.1}
  #allocation0 [shape = 'u32[]', space=smem, size = 0x4, offset = 0x4, fixed_abs, tag = 'smem constant byte address 0x4 - core index']
  #allocation1 [shape = 'u32[144,128]{1,0:T(1,128)}', space=vmem, size = 0x12000, scoped, tag = 'internal scratch']
  %s0 = inlined_call_operand.vmem [shape: s32[8,4], index: 0, kind: input, shape index: {}]
  %s1 = inlined_call_operand.hbm [shape: f32[256,128], index: 1, kind: input, shape index: {}]
  %s2 = inlined_call_operand.hbm [shape: f32[8,128], index: 2, kind: output, shape index: {}]
  %s3 = sld [smem:[#allocation0]]
  $region22: #{tpu_custom_call.1} parent=0
    _
  %s5 = ssub.s32 1, %s3
  %s6 = scalar_select 0, %s5, %s3
  $region1: #{tpu_custom_call.1} parent=0
    #allocation2 [shape = 'u8[131072]{0}', space=vmem, size = 0x20000, scoped, tag = 'input window, operand 1, single buffered']
    #allocation3 [shape = 's32[1]{0}', space=sflag, size = 0x4, scoped, tag = 'scoped memory for tpu_custom_call.1']
    #allocation4 [shape = 's32[1]{0}', space=sflag, size = 0x4, scoped, tag = 'scoped memory for tpu_custom_call.1']
    #allocation5 [shape = 'u8[4096]{0}', space=vmem, size = 0x1000, scoped, tag = 'output window, operand 0, single buffered']
    %7 = vsyncpa [#allocation3], 0
    %8 = vsyncpa [#allocation4], 0
    // Predicated region
    $region2: #{tpu_custom_call.1} parent=1 // pred_check
      _
    $region3: #{tpu_custom_call.1} parent=1 // pred_check_branch
      %10 = sbr.rel (0) target = $region5
    $region4: #{tpu_custom_call.1} parent=1 // pred_region
      _
    $region5: #{tpu_custom_call.1} parent=1 // pred_fallthru
      _
    // Predicated region
    $region6: #{tpu_custom_call.1} parent=1 // pred_check
      _
    $region7: #{tpu_custom_call.1} parent=1 // pred_check_branch
      %12 = sbr.rel (0) target = $region9
    $region8: #{tpu_custom_call.1} parent=1 // pred_region
      %s14 = ssub.s32 4096, 4096
      %15 = vsyncadd [#allocation3], %s14
      %s16 = sshll.u32 [#allocation2], 4
      %s17 = int_to_ptr.vmem [resolvable:$true] %s16
      %22 = dma.hbm_to_vmem [thread:$0]  %s1, 4096, %s17, [#allocation3], 128, 128, 8
    $region9: #{tpu_custom_call.1} parent=1 // pred_fallthru
      _
    // Predicated region
    $region10: #{tpu_custom_call.1} parent=1 // pred_check
      _
    $region11: #{tpu_custom_call.1} parent=1 // pred_check_branch
      %24 = sbr.rel (0) target = $region13
    $region12: #{tpu_custom_call.1} parent=1 // pred_region
      %25 = dma.done [#allocation3], 4096
    $region13: #{tpu_custom_call.1} parent=1 // pred_fallthru
      _
    %v26 = vld [vmem:[%s0] sm:$0xff]
    %v27 = vlaneseq
    %v28 = vand.u32 %v27, 127
    %v29 = vadd.s32 %v28, 128
    %30 = vset.pattern.permute.xlu0 0
    %31 = vperm.xlu0 %30, %v26
    %v32 = vpop.permute.xlu0 %31
    %vm33 = vcmp.eq.s32.totalorder %v32, %v28
    %vm34 = vcmp.eq.s32.totalorder %v32, %v29
    %35 = vset.pattern.permute.xlu0 1
    %36 = vperm.xlu0 %35, %v26
    %v37 = vpop.permute.xlu0 %36
    %vm38 = vcmp.eq.s32.totalorder %v37, %v28
    %vm39 = vcmp.eq.s32.totalorder %v37, %v29
    %vm40 = vmor %vm33, %vm38
    %vm41 = vmor %vm34, %vm39
    %42 = vset.pattern.permute.xlu0 2
    %43 = vperm.xlu0 %42, %v26
    %v44 = vpop.permute.xlu0 %43
    %vm45 = vcmp.eq.s32.totalorder %v44, %v28
    %vm46 = vcmp.eq.s32.totalorder %v44, %v29
    %vm47 = vmor %vm40, %vm45
    %vm48 = vmor %vm41, %vm46
    %49 = vset.pattern.permute.xlu0 3
    %50 = vperm.xlu0 %49, %v26
    %v51 = vpop.permute.xlu0 %50
    %vm52 = vcmp.eq.s32.totalorder %v51, %v28
    %vm53 = vcmp.eq.s32.totalorder %v51, %v29
    %vm54 = vmor %vm47, %vm52
    %vm55 = vmor %vm48, %vm53
    %v56 = vsel %vm54, 1, 0
    %v57 = vsel %vm55, 1, 0
    %v58 = vcvt.s32.f32 %v56
    %v59 = vcvt.s32.f32 %v57
    %v60 = vld [vmem:[#allocation2] sm:$0xff]
    %v61 = vld [vmem:[#allocation2 + $0x8] sm:$0xff]
    %v62 = vld [vmem:[#allocation2 + $0x10] sm:$0xff]
    %v63 = vld [vmem:[#allocation2 + $0x18] sm:$0xff]
    %v64 = vld [vmem:[#allocation2 + $0x20] sm:$0xff]
    %v65 = vld [vmem:[#allocation2 + $0x28] sm:$0xff]
    %v66 = vld [vmem:[#allocation2 + $0x30] sm:$0xff]
    %v67 = vld [vmem:[#allocation2 + $0x38] sm:$0xff]
    %v68 = vld [vmem:[#allocation2 + $0x40] sm:$0xff]
    %v69 = vld [vmem:[#allocation2 + $0x48] sm:$0xff]
    %v70 = vld [vmem:[#allocation2 + $0x50] sm:$0xff]
    %v71 = vld [vmem:[#allocation2 + $0x58] sm:$0xff]
    %v72 = vld [vmem:[#allocation2 + $0x60] sm:$0xff]
    %v73 = vld [vmem:[#allocation2 + $0x68] sm:$0xff]
    %v74 = vld [vmem:[#allocation2 + $0x70] sm:$0xff]
    %v75 = vld [vmem:[#allocation2 + $0x78] sm:$0xff]
    %v76 = vld [vmem:[#allocation2 + $0x80] sm:$0xff]
    %v77 = vld [vmem:[#allocation2 + $0x88] sm:$0xff]
    %v78 = vld [vmem:[#allocation2 + $0x90] sm:$0xff]
    %v79 = vld [vmem:[#allocation2 + $0x98] sm:$0xff]
    %v80 = vld [vmem:[#allocation2 + $0xa0] sm:$0xff]
    %v81 = vld [vmem:[#allocation2 + $0xa8] sm:$0xff]
    %v82 = vld [vmem:[#allocation2 + $0xb0] sm:$0xff]
    %v83 = vld [vmem:[#allocation2 + $0xb8] sm:$0xff]
    %v84 = vld [vmem:[#allocation2 + $0xc0] sm:$0xff]
    %v85 = vld [vmem:[#allocation2 + $0xc8] sm:$0xff]
    %v86 = vld [vmem:[#allocation2 + $0xd0] sm:$0xff]
    %v87 = vld [vmem:[#allocation2 + $0xd8] sm:$0xff]
    %v88 = vld [vmem:[#allocation2 + $0xe0] sm:$0xff]
    %v89 = vld [vmem:[#allocation2 + $0xe8] sm:$0xff]
    %v90 = vld [vmem:[#allocation2 + $0xf0] sm:$0xff]
    %v91 = vld [vmem:[#allocation2 + $0xf8] sm:$0xff]
    %92 = vmatprep.subr.mxu0 0.0
    %v93 = vand.u32 %v60, 4294901760
    %94 = vmatpush1.msra.mxu0 %v93
    %95 = vmatprep.subr.mxu0 0.0
    %v96 = vand.u32 %v61, 4294901760
    %97 = vmatpush1.msra.mxu0 %v96
    %98 = vmatprep.subr.mxu0 0.0
    %v99 = vand.u32 %v62, 4294901760
    %100 = vmatpush1.msra.mxu0 %v99
    %101 = vmatprep.subr.mxu0 0.0
    %v102 = vand.u32 %v63, 4294901760
    %103 = vmatpush1.msra.mxu0 %v102
    %104 = vmatprep.subr.mxu0 0.0
    %v105 = vand.u32 %v64, 4294901760
    %106 = vmatpush1.msra.mxu0 %v105
    %107 = vmatprep.subr.mxu0 0.0
    %v108 = vand.u32 %v65, 4294901760
    %109 = vmatpush1.msra.mxu0 %v108
    %110 = vmatprep.subr.mxu0 0.0
    %v111 = vand.u32 %v66, 4294901760
    %112 = vmatpush1.msra.mxu0 %v111
    %113 = vmatprep.subr.mxu0 0.0
    %v114 = vand.u32 %v67, 4294901760
    %115 = vmatpush1.msra.mxu0 %v114
    %116 = vmatprep.subr.mxu0 0.0
    %v117 = vand.u32 %v68, 4294901760
    %118 = vmatpush1.msra.mxu0 %v117
    %119 = vmatprep.subr.mxu0 0.0
    %v120 = vand.u32 %v69, 4294901760
    %121 = vmatpush1.msra.mxu0 %v120
    %122 = vmatprep.subr.mxu0 0.0
    %v123 = vand.u32 %v70, 4294901760
    %124 = vmatpush1.msra.mxu0 %v123
    %125 = vmatprep.subr.mxu0 0.0
    %v126 = vand.u32 %v71, 4294901760
    %127 = vmatpush1.msra.mxu0 %v126
    %128 = vmatprep.subr.mxu0 0.0
    %v129 = vand.u32 %v72, 4294901760
    %130 = vmatpush1.msra.mxu0 %v129
    %131 = vmatprep.subr.mxu0 0.0
    %v132 = vand.u32 %v73, 4294901760
    %133 = vmatpush1.msra.mxu0 %v132
    %134 = vmatprep.subr.mxu0 0.0
    %v135 = vand.u32 %v74, 4294901760
    %136 = vmatpush1.msra.mxu0 %v135
    %137 = vmatprep.subr.mxu0 0.0
    %v138 = vand.u32 %v75, 4294901760
    %139 = vmatpush1.msra.mxu0 %v138
    %140 = vmatprep.subr.mxu0 0.0
    %v141 = vand.u32 %v76, 4294901760
    %142 = vmatpush1.msra.mxu0 %v141
    %143 = vmatprep.subr.mxu0 0.0
    %v144 = vand.u32 %v77, 4294901760
    %145 = vmatpush1.msra.mxu0 %v144
    %146 = vmatprep.subr.mxu0 0.0
    %v147 = vand.u32 %v78, 4294901760
    %148 = vmatpush1.msra.mxu0 %v147
    %149 = vmatprep.subr.mxu0 0.0
    %v150 = vand.u32 %v79, 4294901760
    %151 = vmatpush1.msra.mxu0 %v150
    %152 = vmatprep.subr.mxu0 0.0
    %v153 = vand.u32 %v80, 4294901760
    %154 = vmatpush1.msra.mxu0 %v153
    %155 = vmatprep.subr.mxu0 0.0
    %v156 = vand.u32 %v81, 4294901760
    %157 = vmatpush1.msra.mxu0 %v156
    %158 = vmatprep.subr.mxu0 0.0
    %v159 = vand.u32 %v82, 4294901760
    %160 = vmatpush1.msra.mxu0 %v159
    %161 = vmatprep.subr.mxu0 0.0
    %v162 = vand.u32 %v83, 4294901760
    %163 = vmatpush1.msra.mxu0 %v162
    %164 = vmatprep.subr.mxu0 0.0
    %v165 = vand.u32 %v84, 4294901760
    %166 = vmatpush1.msra.mxu0 %v165
    %167 = vmatprep.subr.mxu0 0.0
    %v168 = vand.u32 %v85, 4294901760
    %169 = vmatpush1.msra.mxu0 %v168
    %170 = vmatprep.subr.mxu0 0.0
    %v171 = vand.u32 %v86, 4294901760
    %172 = vmatpush1.msra.mxu0 %v171
    %173 = vmatprep.subr.mxu0 0.0
    %v174 = vand.u32 %v87, 4294901760
    %175 = vmatpush1.msra.mxu0 %v174
    %176 = vmatprep.subr.mxu0 0.0
    %v177 = vand.u32 %v88, 4294901760
    %178 = vmatpush1.msra.mxu0 %v177
    %179 = vmatprep.subr.mxu0 0.0
    %v180 = vand.u32 %v89, 4294901760
    %181 = vmatpush1.msra.mxu0 %v180
    %182 = vmatprep.subr.mxu0 0.0
    %v183 = vand.u32 %v90, 4294901760
    %184 = vmatpush1.msra.mxu0 %v183
    %185 = vmatprep.subr.mxu0 0.0
    %v186 = vand.u32 %v91, 4294901760
    %187 = vmatpush1.msra.mxu0 %v186
    %v188 = vand.u32 %v59, 4294901760
    %v189 = vsub.f32 %v59, %v188
    %v190 = vand.u32 %v189, 4294901760
    %v191 = vsub.f32 %v189, %v190
    %v192 = vand.u32 %v191, 4294901760
    %193 = vmatprep.mubr.f32.mxu0 %v192
    %v194 = vand.u32 %v58, 4294901760
    %v195 = vsub.f32 %v58, %v194
    %v196 = vand.u32 %v195, 4294901760
    %v197 = vsub.f32 %v195, %v196
    %v198 = vand.u32 %v197, 4294901760
    %199 = vmatmul.mubr.f32.gmra.mrb[0].mxu0 %v198
    %v200 = vpop.f32.mrb[0].mxu0
    %v201 = vadd.f32 0.0, %v200
    %v202 = vpop.f32.mrb[0].mxu0
    %203 = vdwg.mxu0
    %204 = vmatprep.subr.mxu0 0.0
    %v205 = vand.u32 %v60, 4294901760
    %v206 = vsub.f32 %v60, %v205
    %v207 = vand.u32 %v206, 4294901760
    %v208 = vsub.f32 %v206, %v207
    %v209 = vand.u32 %v208, 4294901760
    %210 = vmatpush1.msra.mxu0 %v209
    %211 = vmatprep.subr.mxu0 0.0
    %v212 = vand.u32 %v61, 4294901760
    %v213 = vsub.f32 %v61, %v212
    %v214 = vand.u32 %v213, 4294901760
    %v215 = vsub.f32 %v213, %v214
    %v216 = vand.u32 %v215, 4294901760
    %217 = vmatpush1.msra.mxu0 %v216
    %218 = vmatprep.subr.mxu0 0.0
    %v219 = vand.u32 %v62, 4294901760
    %v220 = vsub.f32 %v62, %v219
    %v221 = vand.u32 %v220, 4294901760
    %v222 = vsub.f32 %v220, %v221
    %v223 = vand.u32 %v222, 4294901760
    %224 = vmatpush1.msra.mxu0 %v223
    %225 = vmatprep.subr.mxu0 0.0
    %v226 = vand.u32 %v63, 4294901760
    %v227 = vsub.f32 %v63, %v226
    %v228 = vand.u32 %v227, 4294901760
    %v229 = vsub.f32 %v227, %v228
    %v230 = vand.u32 %v229, 4294901760
    %231 = vmatpush1.msra.mxu0 %v230
    %232 = vmatprep.subr.mxu0 0.0
    %v233 = vand.u32 %v64, 4294901760
    %v234 = vsub.f32 %v64, %v233
    %v235 = vand.u32 %v234, 4294901760
    %v236 = vsub.f32 %v234, %v235
    %v237 = vand.u32 %v236, 4294901760
    %238 = vmatpush1.msra.mxu0 %v237
    %239 = vmatprep.subr.mxu0 0.0
    %v240 = vand.u32 %v65, 4294901760
    %v241 = vsub.f32 %v65, %v240
    %v242 = vand.u32 %v241, 4294901760
    %v243 = vsub.f32 %v241, %v242
    %v244 = vand.u32 %v243, 4294901760
    %245 = vmatpush1.msra.mxu0 %v244
    %246 = vmatprep.subr.mxu0 0.0
    %v247 = vand.u32 %v66, 4294901760
    %v248 = vsub.f32 %v66, %v247
    %v249 = vand.u32 %v248, 4294901760
    %v250 = vsub.f32 %v248, %v249
    %v251 = vand.u32 %v250, 4294901760
    %252 = vmatpush1.msra.mxu0 %v251
    %253 = vmatprep.subr.mxu0 0.0
    %v254 = vand.u32 %v67, 4294901760
    %v255 = vsub.f32 %v67, %v254
    %v256 = vand.u32 %v255, 4294901760
    %v257 = vsub.f32 %v255, %v256
    %v258 = vand.u32 %v257, 4294901760
    %259 = vmatpush1.msra.mxu0 %v258
    %260 = vmatprep.subr.mxu0 0.0
    %v261 = vand.u32 %v68, 4294901760
    %v262 = vsub.f32 %v68, %v261
    %v263 = vand.u32 %v262, 4294901760
    %v264 = vsub.f32 %v262, %v263
    %v265 = vand.u32 %v264, 4294901760
    %266 = vmatpush1.msra.mxu0 %v265
    %267 = vmatprep.subr.mxu0 0.0
    %v268 = vand.u32 %v69, 4294901760
    %v269 = vsub.f32 %v69, %v268
    %v270 = vand.u32 %v269, 4294901760
    %v271 = vsub.f32 %v269, %v270
    %v272 = vand.u32 %v271, 4294901760
    %273 = vmatpush1.msra.mxu0 %v272
    %274 = vmatprep.subr.mxu0 0.0
    %v275 = vand.u32 %v70, 4294901760
    %v276 = vsub.f32 %v70, %v275
    %v277 = vand.u32 %v276, 4294901760
    %v278 = vsub.f32 %v276, %v277
    %v279 = vand.u32 %v278, 4294901760
    %280 = vmatpush1.msra.mxu0 %v279
    %281 = vmatprep.subr.mxu0 0.0
    %v282 = vand.u32 %v71, 4294901760
    %v283 = vsub.f32 %v71, %v282
    %v284 = vand.u32 %v283, 4294901760
    %v285 = vsub.f32 %v283, %v284
    %v286 = vand.u32 %v285, 4294901760
    %287 = vmatpush1.msra.mxu0 %v286
    %288 = vmatprep.subr.mxu0 0.0
    %v289 = vand.u32 %v72, 4294901760
    %v290 = vsub.f32 %v72, %v289
    %v291 = vand.u32 %v290, 4294901760
    %v292 = vsub.f32 %v290, %v291
    %v293 = vand.u32 %v292, 4294901760
    %294 = vmatpush1.msra.mxu0 %v293
    %295 = vmatprep.subr.mxu0 0.0
    %v296 = vand.u32 %v73, 4294901760
    %v297 = vsub.f32 %v73, %v296
    %v298 = vand.u32 %v297, 4294901760
    %v299 = vsub.f32 %v297, %v298
    %v300 = vand.u32 %v299, 4294901760
    %301 = vmatpush1.msra.mxu0 %v300
    %302 = vmatprep.subr.mxu0 0.0
    %v303 = vand.u32 %v74, 4294901760
    %v304 = vsub.f32 %v74, %v303
    %v305 = vand.u32 %v304, 4294901760
    %v306 = vsub.f32 %v304, %v305
    %v307 = vand.u32 %v306, 4294901760
    %308 = vmatpush1.msra.mxu0 %v307
    %309 = vmatprep.subr.mxu0 0.0
    %v310 = vand.u32 %v75, 4294901760
    %v311 = vsub.f32 %v75, %v310
    %v312 = vand.u32 %v311, 4294901760
    %v313 = vsub.f32 %v311, %v312
    %v314 = vand.u32 %v313, 4294901760
    %315 = vmatpush1.msra.mxu0 %v314
    %316 = vmatprep.subr.mxu0 0.0
    %v317 = vand.u32 %v76, 4294901760
    %v318 = vsub.f32 %v76, %v317
    %v319 = vand.u32 %v318, 4294901760
    %v320 = vsub.f32 %v318, %v319
    %v321 = vand.u32 %v320, 4294901760
    %322 = vmatpush1.msra.mxu0 %v321
    %323 = vmatprep.subr.mxu0 0.0
    %v324 = vand.u32 %v77, 4294901760
    %v325 = vsub.f32 %v77, %v324
    %v326 = vand.u32 %v325, 4294901760
    %v327 = vsub.f32 %v325, %v326
    %v328 = vand.u32 %v327, 4294901760
    %329 = vmatpush1.msra.mxu0 %v328
    %330 = vmatprep.subr.mxu0 0.0
    %v331 = vand.u32 %v78, 4294901760
    %v332 = vsub.f32 %v78, %v331
    %v333 = vand.u32 %v332, 4294901760
    %v334 = vsub.f32 %v332, %v333
    %v335 = vand.u32 %v334, 4294901760
    %336 = vmatpush1.msra.mxu0 %v335
    %337 = vmatprep.subr.mxu0 0.0
    %v338 = vand.u32 %v79, 4294901760
    %v339 = vsub.f32 %v79, %v338
    %v340 = vand.u32 %v339, 4294901760
    %v341 = vsub.f32 %v339, %v340
    %v342 = vand.u32 %v341, 4294901760
    %343 = vmatpush1.msra.mxu0 %v342
    %344 = vmatprep.subr.mxu0 0.0
    %v345 = vand.u32 %v80, 4294901760
    %v346 = vsub.f32 %v80, %v345
    %v347 = vand.u32 %v346, 4294901760
    %v348 = vsub.f32 %v346, %v347
    %v349 = vand.u32 %v348, 4294901760
    %350 = vmatpush1.msra.mxu0 %v349
    %351 = vmatprep.subr.mxu0 0.0
    %v352 = vand.u32 %v81, 4294901760
    %v353 = vsub.f32 %v81, %v352
    %v354 = vand.u32 %v353, 4294901760
    %v355 = vsub.f32 %v353, %v354
    %v356 = vand.u32 %v355, 4294901760
    %357 = vmatpush1.msra.mxu0 %v356
    %358 = vmatprep.subr.mxu0 0.0
    %v359 = vand.u32 %v82, 4294901760
    %v360 = vsub.f32 %v82, %v359
    %v361 = vand.u32 %v360, 4294901760
    %v362 = vsub.f32 %v360, %v361
    %v363 = vand.u32 %v362, 4294901760
    %364 = vmatpush1.msra.mxu0 %v363
    %365 = vmatprep.subr.mxu0 0.0
    %v366 = vand.u32 %v83, 4294901760
    %v367 = vsub.f32 %v83, %v366
    %v368 = vand.u32 %v367, 4294901760
    %v369 = vsub.f32 %v367, %v368
    %v370 = vand.u32 %v369, 4294901760
    %371 = vmatpush1.msra.mxu0 %v370
    %372 = vmatprep.subr.mxu0 0.0
    %v373 = vand.u32 %v84, 4294901760
    %v374 = vsub.f32 %v84, %v373
    %v375 = vand.u32 %v374, 4294901760
    %v376 = vsub.f32 %v374, %v375
    %v377 = vand.u32 %v376, 4294901760
    %378 = vmatpush1.msra.mxu0 %v377
    %379 = vmatprep.subr.mxu0 0.0
    %v380 = vand.u32 %v85, 4294901760
    %v381 = vsub.f32 %v85, %v380
    %v382 = vand.u32 %v381, 4294901760
    %v383 = vsub.f32 %v381, %v382
    %v384 = vand.u32 %v383, 4294901760
    %385 = vmatpush1.msra.mxu0 %v384
    %386 = vmatprep.subr.mxu0 0.0
    %v387 = vand.u32 %v86, 4294901760
    %v388 = vsub.f32 %v86, %v387
    %v389 = vand.u32 %v388, 4294901760
    %v390 = vsub.f32 %v388, %v389
    %v391 = vand.u32 %v390, 4294901760
    %392 = vmatpush1.msra.mxu0 %v391
    %393 = vmatprep.subr.mxu0 0.0
    %v394 = vand.u32 %v87, 4294901760
    %v395 = vsub.f32 %v87, %v394
    %v396 = vand.u32 %v395, 4294901760
    %v397 = vsub.f32 %v395, %v396
    %v398 = vand.u32 %v397, 4294901760
    %399 = vmatpush1.msra.mxu0 %v398
    %400 = vmatprep.subr.mxu0 0.0
    %v401 = vand.u32 %v88, 4294901760
    %v402 = vsub.f32 %v88, %v401
    %v403 = vand.u32 %v402, 4294901760
    %v404 = vsub.f32 %v402, %v403
    %v405 = vand.u32 %v404, 4294901760
    %406 = vmatpush1.msra.mxu0 %v405
    %407 = vmatprep.subr.mxu0 0.0
    %v408 = vand.u32 %v89, 4294901760
    %v409 = vsub.f32 %v89, %v408
    %v410 = vand.u32 %v409, 4294901760
    %v411 = vsub.f32 %v409, %v410
    %v412 = vand.u32 %v411, 4294901760
    %413 = vmatpush1.msra.mxu0 %v412
    %414 = vmatprep.subr.mxu0 0.0
    %v415 = vand.u32 %v90, 4294901760
    %v416 = vsub.f32 %v90, %v415
    %v417 = vand.u32 %v416, 4294901760
    %v418 = vsub.f32 %v416, %v417
    %v419 = vand.u32 %v418, 4294901760
    %420 = vmatpush1.msra.mxu0 %v419
    %421 = vmatprep.subr.mxu0 0.0
    %v422 = vand.u32 %v91, 4294901760
    %v423 = vsub.f32 %v91, %v422
    %v424 = vand.u32 %v423, 4294901760
    %v425 = vsub.f32 %v423, %v424
    %v426 = vand.u32 %v425, 4294901760
    %427 = vmatpush1.msra.mxu0 %v426
    %v428 = vand.u32 %v59, 4294901760
    %429 = vmatprep.mubr.f32.mxu0 %v428
    %v430 = vand.u32 %v58, 4294901760
    %431 = vmatmul.mubr.f32.gmra.mrb[0].mxu0 %v430
    %v432 = vpop.f32.mrb[0].mxu0
    %v433 = vadd.f32 %v201, %v432
    %v434 = vpop.f32.mrb[0].mxu0
    %435 = vdwg.mxu0
    %436 = vmatprep.subr.mxu0 0.0
    %v437 = vand.u32 %v60, 4294901760
    %v438 = vsub.f32 %v60, %v437
    %439 = vmatpush1.msra.mxu0 %v438
    %440 = vmatprep.subr.mxu0 0.0
    %v441 = vand.u32 %v61, 4294901760
    %v442 = vsub.f32 %v61, %v441
    %443 = vmatpush1.msra.mxu0 %v442
    %444 = vmatprep.subr.mxu0 0.0
    %v445 = vand.u32 %v62, 4294901760
    %v446 = vsub.f32 %v62, %v445
    %447 = vmatpush1.msra.mxu0 %v446
    %448 = vmatprep.subr.mxu0 0.0
    %v449 = vand.u32 %v63, 4294901760
    %v450 = vsub.f32 %v63, %v449
    %451 = vmatpush1.msra.mxu0 %v450
    %452 = vmatprep.subr.mxu0 0.0
    %v453 = vand.u32 %v64, 4294901760
    %v454 = vsub.f32 %v64, %v453
    %455 = vmatpush1.msra.mxu0 %v454
    %456 = vmatprep.subr.mxu0 0.0
    %v457 = vand.u32 %v65, 4294901760
    %v458 = vsub.f32 %v65, %v457
    %459 = vmatpush1.msra.mxu0 %v458
    %460 = vmatprep.subr.mxu0 0.0
    %v461 = vand.u32 %v66, 4294901760
    %v462 = vsub.f32 %v66, %v461
    %463 = vmatpush1.msra.mxu0 %v462
    %464 = vmatprep.subr.mxu0 0.0
    %v465 = vand.u32 %v67, 4294901760
    %v466 = vsub.f32 %v67, %v465
    %467 = vmatpush1.msra.mxu0 %v466
    %468 = vmatprep.subr.mxu0 0.0
    %v469 = vand.u32 %v68, 4294901760
    %v470 = vsub.f32 %v68, %v469
    %471 = vmatpush1.msra.mxu0 %v470
    %472 = vmatprep.subr.mxu0 0.0
    %v473 = vand.u32 %v69, 4294901760
    %v474 = vsub.f32 %v69, %v473
    %475 = vmatpush1.msra.mxu0 %v474
    %476 = vmatprep.subr.mxu0 0.0
    %v477 = vand.u32 %v70, 4294901760
    %v478 = vsub.f32 %v70, %v477
    %479 = vmatpush1.msra.mxu0 %v478
    %480 = vmatprep.subr.mxu0 0.0
    %v481 = vand.u32 %v71, 4294901760
    %v482 = vsub.f32 %v71, %v481
    %483 = vmatpush1.msra.mxu0 %v482
    %484 = vmatprep.subr.mxu0 0.0
    %v485 = vand.u32 %v72, 4294901760
    %v486 = vsub.f32 %v72, %v485
    %487 = vmatpush1.msra.mxu0 %v486
    %488 = vmatprep.subr.mxu0 0.0
    %v489 = vand.u32 %v73, 4294901760
    %v490 = vsub.f32 %v73, %v489
    %491 = vmatpush1.msra.mxu0 %v490
    %492 = vmatprep.subr.mxu0 0.0
    %v493 = vand.u32 %v74, 4294901760
    %v494 = vsub.f32 %v74, %v493
    %495 = vmatpush1.msra.mxu0 %v494
    %496 = vmatprep.subr.mxu0 0.0
    %v497 = vand.u32 %v75, 4294901760
    %v498 = vsub.f32 %v75, %v497
    %499 = vmatpush1.msra.mxu0 %v498
    %500 = vmatprep.subr.mxu0 0.0
    %v501 = vand.u32 %v76, 4294901760
    %v502 = vsub.f32 %v76, %v501
    %503 = vmatpush1.msra.mxu0 %v502
    %504 = vmatprep.subr.mxu0 0.0
    %v505 = vand.u32 %v77, 4294901760
    %v506 = vsub.f32 %v77, %v505
    %507 = vmatpush1.msra.mxu0 %v506
    %508 = vmatprep.subr.mxu0 0.0
    %v509 = vand.u32 %v78, 4294901760
    %v510 = vsub.f32 %v78, %v509
    %511 = vmatpush1.msra.mxu0 %v510
    %512 = vmatprep.subr.mxu0 0.0
    %v513 = vand.u32 %v79, 4294901760
    %v514 = vsub.f32 %v79, %v513
    %515 = vmatpush1.msra.mxu0 %v514
    %516 = vmatprep.subr.mxu0 0.0
    %v517 = vand.u32 %v80, 4294901760
    %v518 = vsub.f32 %v80, %v517
    %519 = vmatpush1.msra.mxu0 %v518
    %520 = vmatprep.subr.mxu0 0.0
    %v521 = vand.u32 %v81, 4294901760
    %v522 = vsub.f32 %v81, %v521
    %523 = vmatpush1.msra.mxu0 %v522
    %524 = vmatprep.subr.mxu0 0.0
    %v525 = vand.u32 %v82, 4294901760
    %v526 = vsub.f32 %v82, %v525
    %527 = vmatpush1.msra.mxu0 %v526
    %528 = vmatprep.subr.mxu0 0.0
    %v529 = vand.u32 %v83, 4294901760
    %v530 = vsub.f32 %v83, %v529
    %531 = vmatpush1.msra.mxu0 %v530
    %532 = vmatprep.subr.mxu0 0.0
    %v533 = vand.u32 %v84, 4294901760
    %v534 = vsub.f32 %v84, %v533
    %535 = vmatpush1.msra.mxu0 %v534
    %536 = vmatprep.subr.mxu0 0.0
    %v537 = vand.u32 %v85, 4294901760
    %v538 = vsub.f32 %v85, %v537
    %539 = vmatpush1.msra.mxu0 %v538
    %540 = vmatprep.subr.mxu0 0.0
    %v541 = vand.u32 %v86, 4294901760
    %v542 = vsub.f32 %v86, %v541
    %543 = vmatpush1.msra.mxu0 %v542
    %544 = vmatprep.subr.mxu0 0.0
    %v545 = vand.u32 %v87, 4294901760
    %v546 = vsub.f32 %v87, %v545
    %547 = vmatpush1.msra.mxu0 %v546
    %548 = vmatprep.subr.mxu0 0.0
    %v549 = vand.u32 %v88, 4294901760
    %v550 = vsub.f32 %v88, %v549
    %551 = vmatpush1.msra.mxu0 %v550
    %552 = vmatprep.subr.mxu0 0.0
    %v553 = vand.u32 %v89, 4294901760
    %v554 = vsub.f32 %v89, %v553
    %555 = vmatpush1.msra.mxu0 %v554
    %556 = vmatprep.subr.mxu0 0.0
    %v557 = vand.u32 %v90, 4294901760
    %v558 = vsub.f32 %v90, %v557
    %559 = vmatpush1.msra.mxu0 %v558
    %560 = vmatprep.subr.mxu0 0.0
    %v561 = vand.u32 %v91, 4294901760
    %v562 = vsub.f32 %v91, %v561
    %563 = vmatpush1.msra.mxu0 %v562
    %v564 = vand.u32 %v59, 4294901760
    %v565 = vsub.f32 %v59, %v564
    %566 = vmatprep.mubr.f32.mxu0 %v565
    %v567 = vand.u32 %v58, 4294901760
    %v568 = vsub.f32 %v58, %v567
    %569 = vmatmul.mubr.f32.gmra.mrb[0].mxu0 %v568
    %v570 = vpop.f32.mrb[0].mxu0
    %v571 = vadd.f32 %v433, %v570
    %v572 = vpop.f32.mrb[0].mxu0
    %573 = vdwg.mxu0
    %574 = vmatprep.subr.mxu0 0.0
    %v575 = vand.u32 %v60, 4294901760
    %576 = vmatpush1.msra.mxu0 %v575
    %577 = vmatprep.subr.mxu0 0.0
    %v578 = vand.u32 %v61, 4294901760
    %579 = vmatpush1.msra.mxu0 %v578
    %580 = vmatprep.subr.mxu0 0.0
    %v581 = vand.u32 %v62, 4294901760
    %582 = vmatpush1.msra.mxu0 %v581
    %583 = vmatprep.subr.mxu0 0.0
    %v584 = vand.u32 %v63, 4294901760
    %585 = vmatpush1.msra.mxu0 %v584
    %586 = vmatprep.subr.mxu0 0.0
    %v587 = vand.u32 %v64, 4294901760
    %588 = vmatpush1.msra.mxu0 %v587
    %589 = vmatprep.subr.mxu0 0.0
    %v590 = vand.u32 %v65, 4294901760
    %591 = vmatpush1.msra.mxu0 %v590
    %592 = vmatprep.subr.mxu0 0.0
    %v593 = vand.u32 %v66, 4294901760
    %594 = vmatpush1.msra.mxu0 %v593
    %595 = vmatprep.subr.mxu0 0.0
    %v596 = vand.u32 %v67, 4294901760
    %597 = vmatpush1.msra.mxu0 %v596
    %598 = vmatprep.subr.mxu0 0.0
    %v599 = vand.u32 %v68, 4294901760
    %600 = vmatpush1.msra.mxu0 %v599
    %601 = vmatprep.subr.mxu0 0.0
    %v602 = vand.u32 %v69, 4294901760
    %603 = vmatpush1.msra.mxu0 %v602
    %604 = vmatprep.subr.mxu0 0.0
    %v605 = vand.u32 %v70, 4294901760
    %606 = vmatpush1.msra.mxu0 %v605
    %607 = vmatprep.subr.mxu0 0.0
    %v608 = vand.u32 %v71, 4294901760
    %609 = vmatpush1.msra.mxu0 %v608
    %610 = vmatprep.subr.mxu0 0.0
    %v611 = vand.u32 %v72, 4294901760
    %612 = vmatpush1.msra.mxu0 %v611
    %613 = vmatprep.subr.mxu0 0.0
    %v614 = vand.u32 %v73, 4294901760
    %615 = vmatpush1.msra.mxu0 %v614
    %616 = vmatprep.subr.mxu0 0.0
    %v617 = vand.u32 %v74, 4294901760
    %618 = vmatpush1.msra.mxu0 %v617
    %619 = vmatprep.subr.mxu0 0.0
    %v620 = vand.u32 %v75, 4294901760
    %621 = vmatpush1.msra.mxu0 %v620
    %622 = vmatprep.subr.mxu0 0.0
    %v623 = vand.u32 %v76, 4294901760
    %624 = vmatpush1.msra.mxu0 %v623
    %625 = vmatprep.subr.mxu0 0.0
    %v626 = vand.u32 %v77, 4294901760
    %627 = vmatpush1.msra.mxu0 %v626
    %628 = vmatprep.subr.mxu0 0.0
    %v629 = vand.u32 %v78, 4294901760
    %630 = vmatpush1.msra.mxu0 %v629
    %631 = vmatprep.subr.mxu0 0.0
    %v632 = vand.u32 %v79, 4294901760
    %633 = vmatpush1.msra.mxu0 %v632
    %634 = vmatprep.subr.mxu0 0.0
    %v635 = vand.u32 %v80, 4294901760
    %636 = vmatpush1.msra.mxu0 %v635
    %637 = vmatprep.subr.mxu0 0.0
    %v638 = vand.u32 %v81, 4294901760
    %639 = vmatpush1.msra.mxu0 %v638
    %640 = vmatprep.subr.mxu0 0.0
    %v641 = vand.u32 %v82, 4294901760
    %642 = vmatpush1.msra.mxu0 %v641
    %643 = vmatprep.subr.mxu0 0.0
    %v644 = vand.u32 %v83, 4294901760
    %645 = vmatpush1.msra.mxu0 %v644
    %646 = vmatprep.subr.mxu0 0.0
    %v647 = vand.u32 %v84, 4294901760
    %648 = vmatpush1.msra.mxu0 %v647
    %649 = vmatprep.subr.mxu0 0.0
    %v650 = vand.u32 %v85, 4294901760
    %651 = vmatpush1.msra.mxu0 %v650
    %652 = vmatprep.subr.mxu0 0.0
    %v653 = vand.u32 %v86, 4294901760
    %654 = vmatpush1.msra.mxu0 %v653
    %655 = vmatprep.subr.mxu0 0.0
    %v656 = vand.u32 %v87, 4294901760
    %657 = vmatpush1.msra.mxu0 %v656
    %658 = vmatprep.subr.mxu0 0.0
    %v659 = vand.u32 %v88, 4294901760
    %660 = vmatpush1.msra.mxu0 %v659
    %661 = vmatprep.subr.mxu0 0.0
    %v662 = vand.u32 %v89, 4294901760
    %663 = vmatpush1.msra.mxu0 %v662
    %664 = vmatprep.subr.mxu0 0.0
    %v665 = vand.u32 %v90, 4294901760
    %666 = vmatpush1.msra.mxu0 %v665
    %667 = vmatprep.subr.mxu0 0.0
    %v668 = vand.u32 %v91, 4294901760
    %669 = vmatpush1.msra.mxu0 %v668
    %v670 = vand.u32 %v59, 4294901760
    %v671 = vsub.f32 %v59, %v670
    %v672 = vand.u32 %v671, 4294901760
    %673 = vmatprep.mubr.f32.mxu0 %v672
    %v674 = vand.u32 %v58, 4294901760
    %v675 = vsub.f32 %v58, %v674
    %v676 = vand.u32 %v675, 4294901760
    %677 = vmatmul.mubr.f32.gmra.mrb[0].mxu0 %v676
    %v678 = vpop.f32.mrb[0].mxu0
    %v679 = vadd.f32 %v571, %v678
    %v680 = vpop.f32.mrb[0].mxu0
    %681 = vdwg.mxu0
    %682 = vmatprep.subr.mxu0 0.0
    %v683 = vand.u32 %v60, 4294901760
    %v684 = vsub.f32 %v60, %v683
    %v685 = vand.u32 %v684, 4294901760
    %686 = vmatpush1.msra.mxu0 %v685
    %687 = vmatprep.subr.mxu0 0.0
    %v688 = vand.u32 %v61, 4294901760
    %v689 = vsub.f32 %v61, %v688
    %v690 = vand.u32 %v689, 4294901760
    %691 = vmatpush1.msra.mxu0 %v690
    %692 = vmatprep.subr.mxu0 0.0
    %v693 = vand.u32 %v62, 4294901760
    %v694 = vsub.f32 %v62, %v693
    %v695 = vand.u32 %v694, 4294901760
    %696 = vmatpush1.msra.mxu0 %v695
    %697 = vmatprep.subr.mxu0 0.0
    %v698 = vand.u32 %v63, 4294901760
    %v699 = vsub.f32 %v63, %v698
    %v700 = vand.u32 %v699, 4294901760
    %701 = vmatpush1.msra.mxu0 %v700
    %702 = vmatprep.subr.mxu0 0.0
    %v703 = vand.u32 %v64, 4294901760
    %v704 = vsub.f32 %v64, %v703
    %v705 = vand.u32 %v704, 4294901760
    %706 = vmatpush1.msra.mxu0 %v705
    %707 = vmatprep.subr.mxu0 0.0
    %v708 = vand.u32 %v65, 4294901760
    %v709 = vsub.f32 %v65, %v708
    %v710 = vand.u32 %v709, 4294901760
    %711 = vmatpush1.msra.mxu0 %v710
    %712 = vmatprep.subr.mxu0 0.0
    %v713 = vand.u32 %v66, 4294901760
    %v714 = vsub.f32 %v66, %v713
    %v715 = vand.u32 %v714, 4294901760
    %716 = vmatpush1.msra.mxu0 %v715
    %717 = vmatprep.subr.mxu0 0.0
    %v718 = vand.u32 %v67, 4294901760
    %v719 = vsub.f32 %v67, %v718
    %v720 = vand.u32 %v719, 4294901760
    %721 = vmatpush1.msra.mxu0 %v720
    %722 = vmatprep.subr.mxu0 0.0
    %v723 = vand.u32 %v68, 4294901760
    %v724 = vsub.f32 %v68, %v723
    %v725 = vand.u32 %v724, 4294901760
    %726 = vmatpush1.msra.mxu0 %v725
    %727 = vmatprep.subr.mxu0 0.0
    %v728 = vand.u32 %v69, 4294901760
    %v729 = vsub.f32 %v69, %v728
    %v730 = vand.u32 %v729, 4294901760
    %731 = vmatpush1.msra.mxu0 %v730
    %732 = vmatprep.subr.mxu0 0.0
    %v733 = vand.u32 %v70, 4294901760
    %v734 = vsub.f32 %v70, %v733
    %v735 = vand.u32 %v734, 4294901760
    %736 = vmatpush1.msra.mxu0 %v735
    %737 = vmatprep.subr.mxu0 0.0
    %v738 = vand.u32 %v71, 4294901760
    %v739 = vsub.f32 %v71, %v738
    %v740 = vand.u32 %v739, 4294901760
    %741 = vmatpush1.msra.mxu0 %v740
    %742 = vmatprep.subr.mxu0 0.0
    %v743 = vand.u32 %v72, 4294901760
    %v744 = vsub.f32 %v72, %v743
    %v745 = vand.u32 %v744, 4294901760
    %746 = vmatpush1.msra.mxu0 %v745
    %747 = vmatprep.subr.mxu0 0.0
    %v748 = vand.u32 %v73, 4294901760
    %v749 = vsub.f32 %v73, %v748
    %v750 = vand.u32 %v749, 4294901760
    %751 = vmatpush1.msra.mxu0 %v750
    %752 = vmatprep.subr.mxu0 0.0
    %v753 = vand.u32 %v74, 4294901760
    %v754 = vsub.f32 %v74, %v753
    %v755 = vand.u32 %v754, 4294901760
    %756 = vmatpush1.msra.mxu0 %v755
    %757 = vmatprep.subr.mxu0 0.0
    %v758 = vand.u32 %v75, 4294901760
    %v759 = vsub.f32 %v75, %v758
    %v760 = vand.u32 %v759, 4294901760
    %761 = vmatpush1.msra.mxu0 %v760
    %762 = vmatprep.subr.mxu0 0.0
    %v763 = vand.u32 %v76, 4294901760
    %v764 = vsub.f32 %v76, %v763
    %v765 = vand.u32 %v764, 4294901760
    %766 = vmatpush1.msra.mxu0 %v765
    %767 = vmatprep.subr.mxu0 0.0
    %v768 = vand.u32 %v77, 4294901760
    %v769 = vsub.f32 %v77, %v768
    %v770 = vand.u32 %v769, 4294901760
    %771 = vmatpush1.msra.mxu0 %v770
    %772 = vmatprep.subr.mxu0 0.0
    %v773 = vand.u32 %v78, 4294901760
    %v774 = vsub.f32 %v78, %v773
    %v775 = vand.u32 %v774, 4294901760
    %776 = vmatpush1.msra.mxu0 %v775
    %777 = vmatprep.subr.mxu0 0.0
    %v778 = vand.u32 %v79, 4294901760
    %v779 = vsub.f32 %v79, %v778
    %v780 = vand.u32 %v779, 4294901760
    %781 = vmatpush1.msra.mxu0 %v780
    %782 = vmatprep.subr.mxu0 0.0
    %v783 = vand.u32 %v80, 4294901760
    %v784 = vsub.f32 %v80, %v783
    %v785 = vand.u32 %v784, 4294901760
    %786 = vmatpush1.msra.mxu0 %v785
    %787 = vmatprep.subr.mxu0 0.0
    %v788 = vand.u32 %v81, 4294901760
    %v789 = vsub.f32 %v81, %v788
    %v790 = vand.u32 %v789, 4294901760
    %791 = vmatpush1.msra.mxu0 %v790
    %792 = vmatprep.subr.mxu0 0.0
    %v793 = vand.u32 %v82, 4294901760
    %v794 = vsub.f32 %v82, %v793
    %v795 = vand.u32 %v794, 4294901760
    %796 = vmatpush1.msra.mxu0 %v795
    %797 = vmatprep.subr.mxu0 0.0
    %v798 = vand.u32 %v83, 4294901760
    %v799 = vsub.f32 %v83, %v798
    %v800 = vand.u32 %v799, 4294901760
    %801 = vmatpush1.msra.mxu0 %v800
    %802 = vmatprep.subr.mxu0 0.0
    %v803 = vand.u32 %v84, 4294901760
    %v804 = vsub.f32 %v84, %v803
    %v805 = vand.u32 %v804, 4294901760
    %806 = vmatpush1.msra.mxu0 %v805
    %807 = vmatprep.subr.mxu0 0.0
    %v808 = vand.u32 %v85, 4294901760
    %v809 = vsub.f32 %v85, %v808
    %v810 = vand.u32 %v809, 4294901760
    %811 = vmatpush1.msra.mxu0 %v810
    %812 = vmatprep.subr.mxu0 0.0
    %v813 = vand.u32 %v86, 4294901760
    %v814 = vsub.f32 %v86, %v813
    %v815 = vand.u32 %v814, 4294901760
    %816 = vmatpush1.msra.mxu0 %v815
    %817 = vmatprep.subr.mxu0 0.0
    %v818 = vand.u32 %v87, 4294901760
    %v819 = vsub.f32 %v87, %v818
    %v820 = vand.u32 %v819, 4294901760
    %821 = vmatpush1.msra.mxu0 %v820
    %822 = vmatprep.subr.mxu0 0.0
    %v823 = vand.u32 %v88, 4294901760
    %v824 = vsub.f32 %v88, %v823
    %v825 = vand.u32 %v824, 4294901760
    %826 = vmatpush1.msra.mxu0 %v825
    %827 = vmatprep.subr.mxu0 0.0
    %v828 = vand.u32 %v89, 4294901760
    %v829 = vsub.f32 %v89, %v828
    %v830 = vand.u32 %v829, 4294901760
    %831 = vmatpush1.msra.mxu0 %v830
    %832 = vmatprep.subr.mxu0 0.0
    %v833 = vand.u32 %v90, 4294901760
    %v834 = vsub.f32 %v90, %v833
    %v835 = vand.u32 %v834, 4294901760
    %836 = vmatpush1.msra.mxu0 %v835
    %837 = vmatprep.subr.mxu0 0.0
    %v838 = vand.u32 %v91, 4294901760
    %v839 = vsub.f32 %v91, %v838
    %v840 = vand.u32 %v839, 4294901760
    %841 = vmatpush1.msra.mxu0 %v840
    %v842 = vand.u32 %v59, 4294901760
    %843 = vmatprep.mubr.f32.mxu0 %v842
    %v844 = vand.u32 %v58, 4294901760
    %845 = vmatmul.mubr.f32.gmra.mrb[0].mxu0 %v844
    %v846 = vpop.f32.mrb[0].mxu0
    %v847 = vadd.f32 %v679, %v846
    %v848 = vpop.f32.mrb[0].mxu0
    %849 = vdwg.mxu0
    %850 = vmatprep.subr.mxu0 0.0
    %v851 = vand.u32 %v60, 4294901760
    %852 = vmatpush1.msra.mxu0 %v851
    %853 = vmatprep.subr.mxu0 0.0
    %v854 = vand.u32 %v61, 4294901760
    %855 = vmatpush1.msra.mxu0 %v854
    %856 = vmatprep.subr.mxu0 0.0
    %v857 = vand.u32 %v62, 4294901760
    %858 = vmatpush1.msra.mxu0 %v857
    %859 = vmatprep.subr.mxu0 0.0
    %v860 = vand.u32 %v63, 4294901760
    %861 = vmatpush1.msra.mxu0 %v860
    %862 = vmatprep.subr.mxu0 0.0
    %v863 = vand.u32 %v64, 4294901760
    %864 = vmatpush1.msra.mxu0 %v863
    %865 = vmatprep.subr.mxu0 0.0
    %v866 = vand.u32 %v65, 4294901760
    %867 = vmatpush1.msra.mxu0 %v866
    %868 = vmatprep.subr.mxu0 0.0
    %v869 = vand.u32 %v66, 4294901760
    %870 = vmatpush1.msra.mxu0 %v869
    %871 = vmatprep.subr.mxu0 0.0
    %v872 = vand.u32 %v67, 4294901760
    %873 = vmatpush1.msra.mxu0 %v872
    %874 = vmatprep.subr.mxu0 0.0
    %v875 = vand.u32 %v68, 4294901760
    %876 = vmatpush1.msra.mxu0 %v875
    %877 = vmatprep.subr.mxu0 0.0
    %v878 = vand.u32 %v69, 4294901760
    %879 = vmatpush1.msra.mxu0 %v878
    %880 = vmatprep.subr.mxu0 0.0
    %v881 = vand.u32 %v70, 4294901760
    %882 = vmatpush1.msra.mxu0 %v881
    %883 = vmatprep.subr.mxu0 0.0
    %v884 = vand.u32 %v71, 4294901760
    %885 = vmatpush1.msra.mxu0 %v884
    %886 = vmatprep.subr.mxu0 0.0
    %v887 = vand.u32 %v72, 4294901760
    %888 = vmatpush1.msra.mxu0 %v887
    %889 = vmatprep.subr.mxu0 0.0
    %v890 = vand.u32 %v73, 4294901760
    %891 = vmatpush1.msra.mxu0 %v890
    %892 = vmatprep.subr.mxu0 0.0
    %v893 = vand.u32 %v74, 4294901760
    %894 = vmatpush1.msra.mxu0 %v893
    %895 = vmatprep.subr.mxu0 0.0
    %v896 = vand.u32 %v75, 4294901760
    %897 = vmatpush1.msra.mxu0 %v896
    %898 = vmatprep.subr.mxu0 0.0
    %v899 = vand.u32 %v76, 4294901760
    %900 = vmatpush1.msra.mxu0 %v899
    %901 = vmatprep.subr.mxu0 0.0
    %v902 = vand.u32 %v77, 4294901760
    %903 = vmatpush1.msra.mxu0 %v902
    %904 = vmatprep.subr.mxu0 0.0
    %v905 = vand.u32 %v78, 4294901760
    %906 = vmatpush1.msra.mxu0 %v905
    %907 = vmatprep.subr.mxu0 0.0
    %v908 = vand.u32 %v79, 4294901760
    %909 = vmatpush1.msra.mxu0 %v908
    %910 = vmatprep.subr.mxu0 0.0
    %v911 = vand.u32 %v80, 4294901760
    %912 = vmatpush1.msra.mxu0 %v911
    %913 = vmatprep.subr.mxu0 0.0
    %v914 = vand.u32 %v81, 4294901760
    %915 = vmatpush1.msra.mxu0 %v914
    %916 = vmatprep.subr.mxu0 0.0
    %v917 = vand.u32 %v82, 4294901760
    %918 = vmatpush1.msra.mxu0 %v917
    %919 = vmatprep.subr.mxu0 0.0
    %v920 = vand.u32 %v83, 4294901760
    %921 = vmatpush1.msra.mxu0 %v920
    %922 = vmatprep.subr.mxu0 0.0
    %v923 = vand.u32 %v84, 4294901760
    %924 = vmatpush1.msra.mxu0 %v923
    %925 = vmatprep.subr.mxu0 0.0
    %v926 = vand.u32 %v85, 4294901760
    %927 = vmatpush1.msra.mxu0 %v926
    %928 = vmatprep.subr.mxu0 0.0
    %v929 = vand.u32 %v86, 4294901760
    %930 = vmatpush1.msra.mxu0 %v929
    %931 = vmatprep.subr.mxu0 0.0
    %v932 = vand.u32 %v87, 4294901760
    %933 = vmatpush1.msra.mxu0 %v932
    %934 = vmatprep.subr.mxu0 0.0
    %v935 = vand.u32 %v88, 4294901760
    %936 = vmatpush1.msra.mxu0 %v935
    %937 = vmatprep.subr.mxu0 0.0
    %v938 = vand.u32 %v89, 4294901760
    %939 = vmatpush1.msra.mxu0 %v938
    %940 = vmatprep.subr.mxu0 0.0
    %v941 = vand.u32 %v90, 4294901760
    %942 = vmatpush1.msra.mxu0 %v941
    %943 = vmatprep.subr.mxu0 0.0
    %v944 = vand.u32 %v91, 4294901760
    %945 = vmatpush1.msra.mxu0 %v944
    %v946 = vand.u32 %v59, 4294901760
    %947 = vmatprep.mubr.f32.mxu0 %v946
    %v948 = vand.u32 %v58, 4294901760
    %949 = vmatmul.mubr.f32.gmra.mrb[0].mxu0 %v948
    %v950 = vpop.f32.mrb[0].mxu0
    %v951 = vadd.f32 %v847, %v950
    %v952 = vpop.f32.mrb[0].mxu0
    %953 = vdwg.mxu0
    %954 = vst [vmem:[#allocation5] sm:$0xff] %v951
    // Predicated region
    $region14: #{tpu_custom_call.1} parent=1 // pred_check
      _
    $region15: #{tpu_custom_call.1} parent=1 // pred_check_branch
      %956 = sbr.rel (0) target = $region17
    $region16: #{tpu_custom_call.1} parent=1 // pred_region
      %s958 = ssub.s32 128, 128
      %959 = vsyncadd [#allocation4], %s958
      %s961 = sshll.u32 [#allocation5], 4
      %s962 = int_to_ptr.vmem [resolvable:$true] %s961
      %964 = dma.vmem_to_hbm [thread:$0]  %s962, 128, %s2, [#allocation4]
    $region17: #{tpu_custom_call.1} parent=1 // pred_fallthru
      _
    // Predicated region
    $region18: #{tpu_custom_call.1} parent=1 // pred_check
      _
    $region19: #{tpu_custom_call.1} parent=1 // pred_check_branch
      %966 = sbr.rel (0) target = $region21
    $region20: #{tpu_custom_call.1} parent=1 // pred_region
      %967 = dma.done [#allocation4], 128
    $region21: #{tpu_custom_call.1} parent=1 // pred_fallthru
      _
    %968 = vsyncpa [#allocation3], 1
    %969 = vsyncpa [#allocation4], 1

// kernel: tpu_custom_call.1
$region0: #{tpu_custom_call.1}
  #allocation0 [shape = 'u32[]', space=smem, size = 0x4, offset = 0x4, fixed_abs, tag = 'smem constant byte address 0x4 - core index']
  #allocation1 [shape = 'u32[144,128]{1,0:T(1,128)}', space=vmem, size = 0x12000, scoped, tag = 'internal scratch']
  %s0 = inlined_call_operand.vmem [shape: s32[8,4], index: 0, kind: input, shape index: {}]
  %s1 = inlined_call_operand.hbm [shape: f32[256,128], index: 1, kind: input, shape index: {}]
  %s2 = inlined_call_operand.hbm [shape: f32[8,128], index: 2, kind: output, shape index: {}]
  %s3 = sld [smem:[#allocation0]]
  $region22: #{tpu_custom_call.1} parent=0
    _
  %s5 = ssub.s32 1, %s3
  %s6 = scalar_select 0, %s5, %s3
  $region1: #{tpu_custom_call.1} parent=0
    #allocation2 [shape = 'u8[131072]{0}', space=vmem, size = 0x20000, scoped, tag = 'input window, operand 1, single buffered']
    #allocation3 [shape = 's32[1]{0}', space=sflag, size = 0x4, scoped, tag = 'scoped memory for tpu_custom_call.1']
    #allocation4 [shape = 's32[1]{0}', space=sflag, size = 0x4, scoped, tag = 'scoped memory for tpu_custom_call.1']
    #allocation5 [shape = 'u8[4096]{0}', space=vmem, size = 0x1000, scoped, tag = 'output window, operand 0, single buffered']
    %7 = vsyncpa [#allocation3], 0
    %8 = vsyncpa [#allocation4], 0
    // Predicated region
    $region2: #{tpu_custom_call.1} parent=1 // pred_check
      _
    $region3: #{tpu_custom_call.1} parent=1 // pred_check_branch
      %10 = sbr.rel (0) target = $region5
    $region4: #{tpu_custom_call.1} parent=1 // pred_region
      _
    $region5: #{tpu_custom_call.1} parent=1 // pred_fallthru
      _
    // Predicated region
    $region6: #{tpu_custom_call.1} parent=1 // pred_check
      _
    $region7: #{tpu_custom_call.1} parent=1 // pred_check_branch
      %12 = sbr.rel (0) target = $region9
    $region8: #{tpu_custom_call.1} parent=1 // pred_region
      %s14 = ssub.s32 4096, 4096
      %15 = vsyncadd [#allocation3], %s14
      %s16 = sshll.u32 [#allocation2], 4
      %s17 = int_to_ptr.vmem [resolvable:$true] %s16
      %22 = dma.hbm_to_vmem [thread:$0]  %s1, 4096, %s17, [#allocation3], 128, 128, 8
    $region9: #{tpu_custom_call.1} parent=1 // pred_fallthru
      _
    // Predicated region
    $region10: #{tpu_custom_call.1} parent=1 // pred_check
      _
    $region11: #{tpu_custom_call.1} parent=1 // pred_check_branch
      %24 = sbr.rel (0) target = $region13
    $region12: #{tpu_custom_call.1} parent=1 // pred_region
      %25 = dma.done [#allocation3], 4096
    $region13: #{tpu_custom_call.1} parent=1 // pred_fallthru
      _
    %v26 = vld [vmem:[%s0] sm:$0xff]
    %v27 = vlaneseq
    %v28 = vand.u32 %v27, 127
    %v29 = vadd.s32 %v28, 128
    %30 = vset.pattern.permute.xlu0 0
    %31 = vperm.xlu0 %30, %v26
    %v32 = vpop.permute.xlu0 %31
    %vm33 = vcmp.eq.s32.totalorder %v32, %v28
    %vm34 = vcmp.eq.s32.totalorder %v32, %v29
    %35 = vset.pattern.permute.xlu0 1
    %36 = vperm.xlu0 %35, %v26
    %v37 = vpop.permute.xlu0 %36
    %vm38 = vcmp.eq.s32.totalorder %v37, %v28
    %vm39 = vcmp.eq.s32.totalorder %v37, %v29
    %vm40 = vmor %vm33, %vm38
    %vm41 = vmor %vm34, %vm39
    %42 = vset.pattern.permute.xlu0 2
    %43 = vperm.xlu0 %42, %v26
    %v44 = vpop.permute.xlu0 %43
    %vm45 = vcmp.eq.s32.totalorder %v44, %v28
    %vm46 = vcmp.eq.s32.totalorder %v44, %v29
    %vm47 = vmor %vm40, %vm45
    %vm48 = vmor %vm41, %vm46
    %49 = vset.pattern.permute.xlu0 3
    %50 = vperm.xlu0 %49, %v26
    %v51 = vpop.permute.xlu0 %50
    %vm52 = vcmp.eq.s32.totalorder %v51, %v28
    %vm53 = vcmp.eq.s32.totalorder %v51, %v29
    %vm54 = vmor %vm47, %vm52
    %vm55 = vmor %vm48, %vm53
    %v56 = vsel %vm54, 1, 0
    %v57 = vsel %vm55, 1, 0
    %v58 = vcvt.s32.f32 %v56
    %v59 = vcvt.s32.f32 %v57
    %v60 = vld [vmem:[#allocation2] sm:$0xff]
    %v61 = vld [vmem:[#allocation2 + $0x8] sm:$0xff]
    %v62 = vld [vmem:[#allocation2 + $0x10] sm:$0xff]
    %v63 = vld [vmem:[#allocation2 + $0x18] sm:$0xff]
    %v64 = vld [vmem:[#allocation2 + $0x20] sm:$0xff]
    %v65 = vld [vmem:[#allocation2 + $0x28] sm:$0xff]
    %v66 = vld [vmem:[#allocation2 + $0x30] sm:$0xff]
    %v67 = vld [vmem:[#allocation2 + $0x38] sm:$0xff]
    %v68 = vld [vmem:[#allocation2 + $0x40] sm:$0xff]
    %v69 = vld [vmem:[#allocation2 + $0x48] sm:$0xff]
    %v70 = vld [vmem:[#allocation2 + $0x50] sm:$0xff]
    %v71 = vld [vmem:[#allocation2 + $0x58] sm:$0xff]
    %v72 = vld [vmem:[#allocation2 + $0x60] sm:$0xff]
    %v73 = vld [vmem:[#allocation2 + $0x68] sm:$0xff]
    %v74 = vld [vmem:[#allocation2 + $0x70] sm:$0xff]
    %v75 = vld [vmem:[#allocation2 + $0x78] sm:$0xff]
    %v76 = vld [vmem:[#allocation2 + $0x80] sm:$0xff]
    %v77 = vld [vmem:[#allocation2 + $0x88] sm:$0xff]
    %v78 = vld [vmem:[#allocation2 + $0x90] sm:$0xff]
    %v79 = vld [vmem:[#allocation2 + $0x98] sm:$0xff]
    %v80 = vld [vmem:[#allocation2 + $0xa0] sm:$0xff]
    %v81 = vld [vmem:[#allocation2 + $0xa8] sm:$0xff]
    %v82 = vld [vmem:[#allocation2 + $0xb0] sm:$0xff]
    %v83 = vld [vmem:[#allocation2 + $0xb8] sm:$0xff]
    %v84 = vld [vmem:[#allocation2 + $0xc0] sm:$0xff]
    %v85 = vld [vmem:[#allocation2 + $0xc8] sm:$0xff]
    %v86 = vld [vmem:[#allocation2 + $0xd0] sm:$0xff]
    %v87 = vld [vmem:[#allocation2 + $0xd8] sm:$0xff]
    %v88 = vld [vmem:[#allocation2 + $0xe0] sm:$0xff]
    %v89 = vld [vmem:[#allocation2 + $0xe8] sm:$0xff]
    %v90 = vld [vmem:[#allocation2 + $0xf0] sm:$0xff]
    %v91 = vld [vmem:[#allocation2 + $0xf8] sm:$0xff]
    %92 = vmatprep.subr.mxu0 0.0
    %v93 = vand.u32 %v60, 4294901760
    %94 = vmatpush1.msra.mxu0 %v93
    %95 = vmatprep.subr.mxu0 0.0
    %v96 = vand.u32 %v61, 4294901760
    %97 = vmatpush1.msra.mxu0 %v96
    %98 = vmatprep.subr.mxu0 0.0
    %v99 = vand.u32 %v62, 4294901760
    %100 = vmatpush1.msra.mxu0 %v99
    %101 = vmatprep.subr.mxu0 0.0
    %v102 = vand.u32 %v63, 4294901760
    %103 = vmatpush1.msra.mxu0 %v102
    %104 = vmatprep.subr.mxu0 0.0
    %v105 = vand.u32 %v64, 4294901760
    %106 = vmatpush1.msra.mxu0 %v105
    %107 = vmatprep.subr.mxu0 0.0
    %v108 = vand.u32 %v65, 4294901760
    %109 = vmatpush1.msra.mxu0 %v108
    %110 = vmatprep.subr.mxu0 0.0
    %v111 = vand.u32 %v66, 4294901760
    %112 = vmatpush1.msra.mxu0 %v111
    %113 = vmatprep.subr.mxu0 0.0
    %v114 = vand.u32 %v67, 4294901760
    %115 = vmatpush1.msra.mxu0 %v114
    %116 = vmatprep.subr.mxu0 0.0
    %v117 = vand.u32 %v68, 4294901760
    %118 = vmatpush1.msra.mxu0 %v117
    %119 = vmatprep.subr.mxu0 0.0
    %v120 = vand.u32 %v69, 4294901760
    %121 = vmatpush1.msra.mxu0 %v120
    %122 = vmatprep.subr.mxu0 0.0
    %v123 = vand.u32 %v70, 4294901760
    %124 = vmatpush1.msra.mxu0 %v123
    %125 = vmatprep.subr.mxu0 0.0
    %v126 = vand.u32 %v71, 4294901760
    %127 = vmatpush1.msra.mxu0 %v126
    %128 = vmatprep.subr.mxu0 0.0
    %v129 = vand.u32 %v72, 4294901760
    %130 = vmatpush1.msra.mxu0 %v129
    %131 = vmatprep.subr.mxu0 0.0
    %v132 = vand.u32 %v73, 4294901760
    %133 = vmatpush1.msra.mxu0 %v132
    %134 = vmatprep.subr.mxu0 0.0
    %v135 = vand.u32 %v74, 4294901760
    %136 = vmatpush1.msra.mxu0 %v135
    %137 = vmatprep.subr.mxu0 0.0
    %v138 = vand.u32 %v75, 4294901760
    %139 = vmatpush1.msra.mxu0 %v138
    %140 = vmatprep.subr.mxu0 0.0
    %v141 = vand.u32 %v76, 4294901760
    %142 = vmatpush1.msra.mxu0 %v141
    %143 = vmatprep.subr.mxu0 0.0
    %v144 = vand.u32 %v77, 4294901760
    %145 = vmatpush1.msra.mxu0 %v144
    %146 = vmatprep.subr.mxu0 0.0
    %v147 = vand.u32 %v78, 4294901760
    %148 = vmatpush1.msra.mxu0 %v147
    %149 = vmatprep.subr.mxu0 0.0
    %v150 = vand.u32 %v79, 4294901760
    %151 = vmatpush1.msra.mxu0 %v150
    %152 = vmatprep.subr.mxu0 0.0
    %v153 = vand.u32 %v80, 4294901760
    %154 = vmatpush1.msra.mxu0 %v153
    %155 = vmatprep.subr.mxu0 0.0
    %v156 = vand.u32 %v81, 4294901760
    %157 = vmatpush1.msra.mxu0 %v156
    %158 = vmatprep.subr.mxu0 0.0
    %v159 = vand.u32 %v82, 4294901760
    %160 = vmatpush1.msra.mxu0 %v159
    %161 = vmatprep.subr.mxu0 0.0
    %v162 = vand.u32 %v83, 4294901760
    %163 = vmatpush1.msra.mxu0 %v162
    %164 = vmatprep.subr.mxu0 0.0
    %v165 = vand.u32 %v84, 4294901760
    %166 = vmatpush1.msra.mxu0 %v165
    %167 = vmatprep.subr.mxu0 0.0
    %v168 = vand.u32 %v85, 4294901760
    %169 = vmatpush1.msra.mxu0 %v168
    %170 = vmatprep.subr.mxu0 0.0
    %v171 = vand.u32 %v86, 4294901760
    %172 = vmatpush1.msra.mxu0 %v171
    %173 = vmatprep.subr.mxu0 0.0
    %v174 = vand.u32 %v87, 4294901760
    %175 = vmatpush1.msra.mxu0 %v174
    %176 = vmatprep.subr.mxu0 0.0
    %v177 = vand.u32 %v88, 4294901760
    %178 = vmatpush1.msra.mxu0 %v177
    %179 = vmatprep.subr.mxu0 0.0
    %v180 = vand.u32 %v89, 4294901760
    %181 = vmatpush1.msra.mxu0 %v180
    %182 = vmatprep.subr.mxu0 0.0
    %v183 = vand.u32 %v90, 4294901760
    %184 = vmatpush1.msra.mxu0 %v183
    %185 = vmatprep.subr.mxu0 0.0
    %v186 = vand.u32 %v91, 4294901760
    %187 = vmatpush1.msra.mxu0 %v186
    %v188 = vand.u32 %v59, 4294901760
    %v189 = vsub.f32 %v59, %v188
    %v190 = vand.u32 %v189, 4294901760
    %v191 = vsub.f32 %v189, %v190
    %v192 = vand.u32 %v191, 4294901760
    %193 = vmatprep.mubr.f32.mxu0 %v192
    %v194 = vand.u32 %v58, 4294901760
    %v195 = vsub.f32 %v58, %v194
    %v196 = vand.u32 %v195, 4294901760
    %v197 = vsub.f32 %v195, %v196
    %v198 = vand.u32 %v197, 4294901760
    %199 = vmatmul.mubr.f32.gmra.mrb[0].mxu0 %v198
    %v200 = vpop.f32.mrb[0].mxu0
    %v201 = vadd.f32 0.0, %v200
    %v202 = vpop.f32.mrb[0].mxu0
    %203 = vdwg.mxu0
    %204 = vmatprep.subr.mxu0 0.0
    %v205 = vand.u32 %v60, 4294901760
    %v206 = vsub.f32 %v60, %v205
    %v207 = vand.u32 %v206, 4294901760
    %v208 = vsub.f32 %v206, %v207
    %v209 = vand.u32 %v208, 4294901760
    %210 = vmatpush1.msra.mxu0 %v209
    %211 = vmatprep.subr.mxu0 0.0
    %v212 = vand.u32 %v61, 4294901760
    %v213 = vsub.f32 %v61, %v212
    %v214 = vand.u32 %v213, 4294901760
    %v215 = vsub.f32 %v213, %v214
    %v216 = vand.u32 %v215, 4294901760
    %217 = vmatpush1.msra.mxu0 %v216
    %218 = vmatprep.subr.mxu0 0.0
    %v219 = vand.u32 %v62, 4294901760
    %v220 = vsub.f32 %v62, %v219
    %v221 = vand.u32 %v220, 4294901760
    %v222 = vsub.f32 %v220, %v221
    %v223 = vand.u32 %v222, 4294901760
    %224 = vmatpush1.msra.mxu0 %v223
    %225 = vmatprep.subr.mxu0 0.0
    %v226 = vand.u32 %v63, 4294901760
    %v227 = vsub.f32 %v63, %v226
    %v228 = vand.u32 %v227, 4294901760
    %v229 = vsub.f32 %v227, %v228
    %v230 = vand.u32 %v229, 4294901760
    %231 = vmatpush1.msra.mxu0 %v230
    %232 = vmatprep.subr.mxu0 0.0
    %v233 = vand.u32 %v64, 4294901760
    %v234 = vsub.f32 %v64, %v233
    %v235 = vand.u32 %v234, 4294901760
    %v236 = vsub.f32 %v234, %v235
    %v237 = vand.u32 %v236, 4294901760
    %238 = vmatpush1.msra.mxu0 %v237
    %239 = vmatprep.subr.mxu0 0.0
    %v240 = vand.u32 %v65, 4294901760
    %v241 = vsub.f32 %v65, %v240
    %v242 = vand.u32 %v241, 4294901760
    %v243 = vsub.f32 %v241, %v242
    %v244 = vand.u32 %v243, 4294901760
    %245 = vmatpush1.msra.mxu0 %v244
    %246 = vmatprep.subr.mxu0 0.0
    %v247 = vand.u32 %v66, 4294901760
    %v248 = vsub.f32 %v66, %v247
    %v249 = vand.u32 %v248, 4294901760
    %v250 = vsub.f32 %v248, %v249
    %v251 = vand.u32 %v250, 4294901760
    %252 = vmatpush1.msra.mxu0 %v251
    %253 = vmatprep.subr.mxu0 0.0
    %v254 = vand.u32 %v67, 4294901760
    %v255 = vsub.f32 %v67, %v254
    %v256 = vand.u32 %v255, 4294901760
    %v257 = vsub.f32 %v255, %v256
    %v258 = vand.u32 %v257, 4294901760
    %259 = vmatpush1.msra.mxu0 %v258
    %260 = vmatprep.subr.mxu0 0.0
    %v261 = vand.u32 %v68, 4294901760
    %v262 = vsub.f32 %v68, %v261
    %v263 = vand.u32 %v262, 4294901760
    %v264 = vsub.f32 %v262, %v263
    %v265 = vand.u32 %v264, 4294901760
    %266 = vmatpush1.msra.mxu0 %v265
    %267 = vmatprep.subr.mxu0 0.0
    %v268 = vand.u32 %v69, 4294901760
    %v269 = vsub.f32 %v69, %v268
    %v270 = vand.u32 %v269, 4294901760
    %v271 = vsub.f32 %v269, %v270
    %v272 = vand.u32 %v271, 4294901760
    %273 = vmatpush1.msra.mxu0 %v272
    %274 = vmatprep.subr.mxu0 0.0
    %v275 = vand.u32 %v70, 4294901760
    %v276 = vsub.f32 %v70, %v275
    %v277 = vand.u32 %v276, 4294901760
    %v278 = vsub.f32 %v276, %v277
    %v279 = vand.u32 %v278, 4294901760
    %280 = vmatpush1.msra.mxu0 %v279
    %281 = vmatprep.subr.mxu0 0.0
    %v282 = vand.u32 %v71, 4294901760
    %v283 = vsub.f32 %v71, %v282
    %v284 = vand.u32 %v283, 4294901760
    %v285 = vsub.f32 %v283, %v284
    %v286 = vand.u32 %v285, 4294901760
    %287 = vmatpush1.msra.mxu0 %v286
    %288 = vmatprep.subr.mxu0 0.0
    %v289 = vand.u32 %v72, 4294901760
    %v290 = vsub.f32 %v72, %v289
    %v291 = vand.u32 %v290, 4294901760
    %v292 = vsub.f32 %v290, %v291
    %v293 = vand.u32 %v292, 4294901760
    %294 = vmatpush1.msra.mxu0 %v293
    %295 = vmatprep.subr.mxu0 0.0
    %v296 = vand.u32 %v73, 4294901760
    %v297 = vsub.f32 %v73, %v296
    %v298 = vand.u32 %v297, 4294901760
    %v299 = vsub.f32 %v297, %v298
    %v300 = vand.u32 %v299, 4294901760
    %301 = vmatpush1.msra.mxu0 %v300
    %302 = vmatprep.subr.mxu0 0.0
    %v303 = vand.u32 %v74, 4294901760
    %v304 = vsub.f32 %v74, %v303
    %v305 = vand.u32 %v304, 4294901760
    %v306 = vsub.f32 %v304, %v305
    %v307 = vand.u32 %v306, 4294901760
    %308 = vmatpush1.msra.mxu0 %v307
    %309 = vmatprep.subr.mxu0 0.0
    %v310 = vand.u32 %v75, 4294901760
    %v311 = vsub.f32 %v75, %v310
    %v312 = vand.u32 %v311, 4294901760
    %v313 = vsub.f32 %v311, %v312
    %v314 = vand.u32 %v313, 4294901760
    %315 = vmatpush1.msra.mxu0 %v314
    %316 = vmatprep.subr.mxu0 0.0
    %v317 = vand.u32 %v76, 4294901760
    %v318 = vsub.f32 %v76, %v317
    %v319 = vand.u32 %v318, 4294901760
    %v320 = vsub.f32 %v318, %v319
    %v321 = vand.u32 %v320, 4294901760
    %322 = vmatpush1.msra.mxu0 %v321
    %323 = vmatprep.subr.mxu0 0.0
    %v324 = vand.u32 %v77, 4294901760
    %v325 = vsub.f32 %v77, %v324
    %v326 = vand.u32 %v325, 4294901760
    %v327 = vsub.f32 %v325, %v326
    %v328 = vand.u32 %v327, 4294901760
    %329 = vmatpush1.msra.mxu0 %v328
    %330 = vmatprep.subr.mxu0 0.0
    %v331 = vand.u32 %v78, 4294901760
    %v332 = vsub.f32 %v78, %v331
    %v333 = vand.u32 %v332, 4294901760
    %v334 = vsub.f32 %v332, %v333
    %v335 = vand.u32 %v334, 4294901760
    %336 = vmatpush1.msra.mxu0 %v335
    %337 = vmatprep.subr.mxu0 0.0
    %v338 = vand.u32 %v79, 4294901760
    %v339 = vsub.f32 %v79, %v338
    %v340 = vand.u32 %v339, 4294901760
    %v341 = vsub.f32 %v339, %v340
    %v342 = vand.u32 %v341, 4294901760
    %343 = vmatpush1.msra.mxu0 %v342
    %344 = vmatprep.subr.mxu0 0.0
    %v345 = vand.u32 %v80, 4294901760
    %v346 = vsub.f32 %v80, %v345
    %v347 = vand.u32 %v346, 4294901760
    %v348 = vsub.f32 %v346, %v347
    %v349 = vand.u32 %v348, 4294901760
    %350 = vmatpush1.msra.mxu0 %v349
    %351 = vmatprep.subr.mxu0 0.0
    %v352 = vand.u32 %v81, 4294901760
    %v353 = vsub.f32 %v81, %v352
    %v354 = vand.u32 %v353, 4294901760
    %v355 = vsub.f32 %v353, %v354
    %v356 = vand.u32 %v355, 4294901760
    %357 = vmatpush1.msra.mxu0 %v356
    %358 = vmatprep.subr.mxu0 0.0
    %v359 = vand.u32 %v82, 4294901760
    %v360 = vsub.f32 %v82, %v359
    %v361 = vand.u32 %v360, 4294901760
    %v362 = vsub.f32 %v360, %v361
    %v363 = vand.u32 %v362, 4294901760
    %364 = vmatpush1.msra.mxu0 %v363
    %365 = vmatprep.subr.mxu0 0.0
    %v366 = vand.u32 %v83, 4294901760
    %v367 = vsub.f32 %v83, %v366
    %v368 = vand.u32 %v367, 4294901760
    %v369 = vsub.f32 %v367, %v368
    %v370 = vand.u32 %v369, 4294901760
    %371 = vmatpush1.msra.mxu0 %v370
    %372 = vmatprep.subr.mxu0 0.0
    %v373 = vand.u32 %v84, 4294901760
    %v374 = vsub.f32 %v84, %v373
    %v375 = vand.u32 %v374, 4294901760
    %v376 = vsub.f32 %v374, %v375
    %v377 = vand.u32 %v376, 4294901760
    %378 = vmatpush1.msra.mxu0 %v377
    %379 = vmatprep.subr.mxu0 0.0
    %v380 = vand.u32 %v85, 4294901760
    %v381 = vsub.f32 %v85, %v380
    %v382 = vand.u32 %v381, 4294901760
    %v383 = vsub.f32 %v381, %v382
    %v384 = vand.u32 %v383, 4294901760
    %385 = vmatpush1.msra.mxu0 %v384
    %386 = vmatprep.subr.mxu0 0.0
    %v387 = vand.u32 %v86, 4294901760
    %v388 = vsub.f32 %v86, %v387
    %v389 = vand.u32 %v388, 4294901760
    %v390 = vsub.f32 %v388, %v389
    %v391 = vand.u32 %v390, 4294901760
    %392 = vmatpush1.msra.mxu0 %v391
    %393 = vmatprep.subr.mxu0 0.0
    %v394 = vand.u32 %v87, 4294901760
    %v395 = vsub.f32 %v87, %v394
    %v396 = vand.u32 %v395, 4294901760
    %v397 = vsub.f32 %v395, %v396
    %v398 = vand.u32 %v397, 4294901760
    %399 = vmatpush1.msra.mxu0 %v398
    %400 = vmatprep.subr.mxu0 0.0
    %v401 = vand.u32 %v88, 4294901760
    %v402 = vsub.f32 %v88, %v401
    %v403 = vand.u32 %v402, 4294901760
    %v404 = vsub.f32 %v402, %v403
    %v405 = vand.u32 %v404, 4294901760
    %406 = vmatpush1.msra.mxu0 %v405
    %407 = vmatprep.subr.mxu0 0.0
    %v408 = vand.u32 %v89, 4294901760
    %v409 = vsub.f32 %v89, %v408
    %v410 = vand.u32 %v409, 4294901760
    %v411 = vsub.f32 %v409, %v410
    %v412 = vand.u32 %v411, 4294901760
    %413 = vmatpush1.msra.mxu0 %v412
    %414 = vmatprep.subr.mxu0 0.0
    %v415 = vand.u32 %v90, 4294901760
    %v416 = vsub.f32 %v90, %v415
    %v417 = vand.u32 %v416, 4294901760
    %v418 = vsub.f32 %v416, %v417
    %v419 = vand.u32 %v418, 4294901760
    %420 = vmatpush1.msra.mxu0 %v419
    %421 = vmatprep.subr.mxu0 0.0
    %v422 = vand.u32 %v91, 4294901760
    %v423 = vsub.f32 %v91, %v422
    %v424 = vand.u32 %v423, 4294901760
    %v425 = vsub.f32 %v423, %v424
    %v426 = vand.u32 %v425, 4294901760
    %427 = vmatpush1.msra.mxu0 %v426
    %v428 = vand.u32 %v59, 4294901760
    %429 = vmatprep.mubr.f32.mxu0 %v428
    %v430 = vand.u32 %v58, 4294901760
    %431 = vmatmul.mubr.f32.gmra.mrb[0].mxu0 %v430
    %v432 = vpop.f32.mrb[0].mxu0
    %v433 = vadd.f32 %v201, %v432
    %v434 = vpop.f32.mrb[0].mxu0
    %435 = vdwg.mxu0
    %436 = vmatprep.subr.mxu0 0.0
    %v437 = vand.u32 %v60, 4294901760
    %v438 = vsub.f32 %v60, %v437
    %439 = vmatpush1.msra.mxu0 %v438
    %440 = vmatprep.subr.mxu0 0.0
    %v441 = vand.u32 %v61, 4294901760
    %v442 = vsub.f32 %v61, %v441
    %443 = vmatpush1.msra.mxu0 %v442
    %444 = vmatprep.subr.mxu0 0.0
    %v445 = vand.u32 %v62, 4294901760
    %v446 = vsub.f32 %v62, %v445
    %447 = vmatpush1.msra.mxu0 %v446
    %448 = vmatprep.subr.mxu0 0.0
    %v449 = vand.u32 %v63, 4294901760
    %v450 = vsub.f32 %v63, %v449
    %451 = vmatpush1.msra.mxu0 %v450
    %452 = vmatprep.subr.mxu0 0.0
    %v453 = vand.u32 %v64, 4294901760
    %v454 = vsub.f32 %v64, %v453
    %455 = vmatpush1.msra.mxu0 %v454
    %456 = vmatprep.subr.mxu0 0.0
    %v457 = vand.u32 %v65, 4294901760
    %v458 = vsub.f32 %v65, %v457
    %459 = vmatpush1.msra.mxu0 %v458
    %460 = vmatprep.subr.mxu0 0.0
    %v461 = vand.u32 %v66, 4294901760
    %v462 = vsub.f32 %v66, %v461
    %463 = vmatpush1.msra.mxu0 %v462
    %464 = vmatprep.subr.mxu0 0.0
    %v465 = vand.u32 %v67, 4294901760
    %v466 = vsub.f32 %v67, %v465
    %467 = vmatpush1.msra.mxu0 %v466
    %468 = vmatprep.subr.mxu0 0.0
    %v469 = vand.u32 %v68, 4294901760
    %v470 = vsub.f32 %v68, %v469
    %471 = vmatpush1.msra.mxu0 %v470
    %472 = vmatprep.subr.mxu0 0.0
    %v473 = vand.u32 %v69, 4294901760
    %v474 = vsub.f32 %v69, %v473
    %475 = vmatpush1.msra.mxu0 %v474
    %476 = vmatprep.subr.mxu0 0.0
    %v477 = vand.u32 %v70, 4294901760
    %v478 = vsub.f32 %v70, %v477
    %479 = vmatpush1.msra.mxu0 %v478
    %480 = vmatprep.subr.mxu0 0.0
    %v481 = vand.u32 %v71, 4294901760
    %v482 = vsub.f32 %v71, %v481
    %483 = vmatpush1.msra.mxu0 %v482
    %484 = vmatprep.subr.mxu0 0.0
    %v485 = vand.u32 %v72, 4294901760
    %v486 = vsub.f32 %v72, %v485
    %487 = vmatpush1.msra.mxu0 %v486
    %488 = vmatprep.subr.mxu0 0.0
    %v489 = vand.u32 %v73, 4294901760
    %v490 = vsub.f32 %v73, %v489
    %491 = vmatpush1.msra.mxu0 %v490
    %492 = vmatprep.subr.mxu0 0.0
    %v493 = vand.u32 %v74, 4294901760
    %v494 = vsub.f32 %v74, %v493
    %495 = vmatpush1.msra.mxu0 %v494
    %496 = vmatprep.subr.mxu0 0.0
    %v497 = vand.u32 %v75, 4294901760
    %v498 = vsub.f32 %v75, %v497
    %499 = vmatpush1.msra.mxu0 %v498
    %500 = vmatprep.subr.mxu0 0.0
    %v501 = vand.u32 %v76, 4294901760
    %v502 = vsub.f32 %v76, %v501
    %503 = vmatpush1.msra.mxu0 %v502
    %504 = vmatprep.subr.mxu0 0.0
    %v505 = vand.u32 %v77, 4294901760
    %v506 = vsub.f32 %v77, %v505
    %507 = vmatpush1.msra.mxu0 %v506
    %508 = vmatprep.subr.mxu0 0.0
    %v509 = vand.u32 %v78, 4294901760
    %v510 = vsub.f32 %v78, %v509
    %511 = vmatpush1.msra.mxu0 %v510
    %512 = vmatprep.subr.mxu0 0.0
    %v513 = vand.u32 %v79, 4294901760
    %v514 = vsub.f32 %v79, %v513
    %515 = vmatpush1.msra.mxu0 %v514
    %516 = vmatprep.subr.mxu0 0.0
    %v517 = vand.u32 %v80, 4294901760
    %v518 = vsub.f32 %v80, %v517
    %519 = vmatpush1.msra.mxu0 %v518
    %520 = vmatprep.subr.mxu0 0.0
    %v521 = vand.u32 %v81, 4294901760
    %v522 = vsub.f32 %v81, %v521
    %523 = vmatpush1.msra.mxu0 %v522
    %524 = vmatprep.subr.mxu0 0.0
    %v525 = vand.u32 %v82, 4294901760
    %v526 = vsub.f32 %v82, %v525
    %527 = vmatpush1.msra.mxu0 %v526
    %528 = vmatprep.subr.mxu0 0.0
    %v529 = vand.u32 %v83, 4294901760
    %v530 = vsub.f32 %v83, %v529
    %531 = vmatpush1.msra.mxu0 %v530
    %532 = vmatprep.subr.mxu0 0.0
    %v533 = vand.u32 %v84, 4294901760
    %v534 = vsub.f32 %v84, %v533
    %535 = vmatpush1.msra.mxu0 %v534
    %536 = vmatprep.subr.mxu0 0.0
    %v537 = vand.u32 %v85, 4294901760
    %v538 = vsub.f32 %v85, %v537
    %539 = vmatpush1.msra.mxu0 %v538
    %540 = vmatprep.subr.mxu0 0.0
    %v541 = vand.u32 %v86, 4294901760
    %v542 = vsub.f32 %v86, %v541
    %543 = vmatpush1.msra.mxu0 %v542
    %544 = vmatprep.subr.mxu0 0.0
    %v545 = vand.u32 %v87, 4294901760
    %v546 = vsub.f32 %v87, %v545
    %547 = vmatpush1.msra.mxu0 %v546
    %548 = vmatprep.subr.mxu0 0.0
    %v549 = vand.u32 %v88, 4294901760
    %v550 = vsub.f32 %v88, %v549
    %551 = vmatpush1.msra.mxu0 %v550
    %552 = vmatprep.subr.mxu0 0.0
    %v553 = vand.u32 %v89, 4294901760
    %v554 = vsub.f32 %v89, %v553
    %555 = vmatpush1.msra.mxu0 %v554
    %556 = vmatprep.subr.mxu0 0.0
    %v557 = vand.u32 %v90, 4294901760
    %v558 = vsub.f32 %v90, %v557
    %559 = vmatpush1.msra.mxu0 %v558
    %560 = vmatprep.subr.mxu0 0.0
    %v561 = vand.u32 %v91, 4294901760
    %v562 = vsub.f32 %v91, %v561
    %563 = vmatpush1.msra.mxu0 %v562
    %v564 = vand.u32 %v59, 4294901760
    %v565 = vsub.f32 %v59, %v564
    %566 = vmatprep.mubr.f32.mxu0 %v565
    %v567 = vand.u32 %v58, 4294901760
    %v568 = vsub.f32 %v58, %v567
    %569 = vmatmul.mubr.f32.gmra.mrb[0].mxu0 %v568
    %v570 = vpop.f32.mrb[0].mxu0
    %v571 = vadd.f32 %v433, %v570
    %v572 = vpop.f32.mrb[0].mxu0
    %573 = vdwg.mxu0
    %574 = vmatprep.subr.mxu0 0.0
    %v575 = vand.u32 %v60, 4294901760
    %576 = vmatpush1.msra.mxu0 %v575
    %577 = vmatprep.subr.mxu0 0.0
    %v578 = vand.u32 %v61, 4294901760
    %579 = vmatpush1.msra.mxu0 %v578
    %580 = vmatprep.subr.mxu0 0.0
    %v581 = vand.u32 %v62, 4294901760
    %582 = vmatpush1.msra.mxu0 %v581
    %583 = vmatprep.subr.mxu0 0.0
    %v584 = vand.u32 %v63, 4294901760
    %585 = vmatpush1.msra.mxu0 %v584
    %586 = vmatprep.subr.mxu0 0.0
    %v587 = vand.u32 %v64, 4294901760
    %588 = vmatpush1.msra.mxu0 %v587
    %589 = vmatprep.subr.mxu0 0.0
    %v590 = vand.u32 %v65, 4294901760
    %591 = vmatpush1.msra.mxu0 %v590
    %592 = vmatprep.subr.mxu0 0.0
    %v593 = vand.u32 %v66, 4294901760
    %594 = vmatpush1.msra.mxu0 %v593
    %595 = vmatprep.subr.mxu0 0.0
    %v596 = vand.u32 %v67, 4294901760
    %597 = vmatpush1.msra.mxu0 %v596
    %598 = vmatprep.subr.mxu0 0.0
    %v599 = vand.u32 %v68, 4294901760
    %600 = vmatpush1.msra.mxu0 %v599
    %601 = vmatprep.subr.mxu0 0.0
    %v602 = vand.u32 %v69, 4294901760
    %603 = vmatpush1.msra.mxu0 %v602
    %604 = vmatprep.subr.mxu0 0.0
    %v605 = vand.u32 %v70, 4294901760
    %606 = vmatpush1.msra.mxu0 %v605
    %607 = vmatprep.subr.mxu0 0.0
    %v608 = vand.u32 %v71, 4294901760
    %609 = vmatpush1.msra.mxu0 %v608
    %610 = vmatprep.subr.mxu0 0.0
    %v611 = vand.u32 %v72, 4294901760
    %612 = vmatpush1.msra.mxu0 %v611
    %613 = vmatprep.subr.mxu0 0.0
    %v614 = vand.u32 %v73, 4294901760
    %615 = vmatpush1.msra.mxu0 %v614
    %616 = vmatprep.subr.mxu0 0.0
    %v617 = vand.u32 %v74, 4294901760
    %618 = vmatpush1.msra.mxu0 %v617
    %619 = vmatprep.subr.mxu0 0.0
    %v620 = vand.u32 %v75, 4294901760
    %621 = vmatpush1.msra.mxu0 %v620
    %622 = vmatprep.subr.mxu0 0.0
    %v623 = vand.u32 %v76, 4294901760
    %624 = vmatpush1.msra.mxu0 %v623
    %625 = vmatprep.subr.mxu0 0.0
    %v626 = vand.u32 %v77, 4294901760
    %627 = vmatpush1.msra.mxu0 %v626
    %628 = vmatprep.subr.mxu0 0.0
    %v629 = vand.u32 %v78, 4294901760
    %630 = vmatpush1.msra.mxu0 %v629
    %631 = vmatprep.subr.mxu0 0.0
    %v632 = vand.u32 %v79, 4294901760
    %633 = vmatpush1.msra.mxu0 %v632
    %634 = vmatprep.subr.mxu0 0.0
    %v635 = vand.u32 %v80, 4294901760
    %636 = vmatpush1.msra.mxu0 %v635
    %637 = vmatprep.subr.mxu0 0.0
    %v638 = vand.u32 %v81, 4294901760
    %639 = vmatpush1.msra.mxu0 %v638
    %640 = vmatprep.subr.mxu0 0.0
    %v641 = vand.u32 %v82, 4294901760
    %642 = vmatpush1.msra.mxu0 %v641
    %643 = vmatprep.subr.mxu0 0.0
    %v644 = vand.u32 %v83, 4294901760
    %645 = vmatpush1.msra.mxu0 %v644
    %646 = vmatprep.subr.mxu0 0.0
    %v647 = vand.u32 %v84, 4294901760
    %648 = vmatpush1.msra.mxu0 %v647
    %649 = vmatprep.subr.mxu0 0.0
    %v650 = vand.u32 %v85, 4294901760
    %651 = vmatpush1.msra.mxu0 %v650
    %652 = vmatprep.subr.mxu0 0.0
    %v653 = vand.u32 %v86, 4294901760
    %654 = vmatpush1.msra.mxu0 %v653
    %655 = vmatprep.subr.mxu0 0.0
    %v656 = vand.u32 %v87, 4294901760
    %657 = vmatpush1.msra.mxu0 %v656
    %658 = vmatprep.subr.mxu0 0.0
    %v659 = vand.u32 %v88, 4294901760
    %660 = vmatpush1.msra.mxu0 %v659
    %661 = vmatprep.subr.mxu0 0.0
    %v662 = vand.u32 %v89, 4294901760
    %663 = vmatpush1.msra.mxu0 %v662
    %664 = vmatprep.subr.mxu0 0.0
    %v665 = vand.u32 %v90, 4294901760
    %666 = vmatpush1.msra.mxu0 %v665
    %667 = vmatprep.subr.mxu0 0.0
    %v668 = vand.u32 %v91, 4294901760
    %669 = vmatpush1.msra.mxu0 %v668
    %v670 = vand.u32 %v59, 4294901760
    %v671 = vsub.f32 %v59, %v670
    %v672 = vand.u32 %v671, 4294901760
    %673 = vmatprep.mubr.f32.mxu0 %v672
    %v674 = vand.u32 %v58, 4294901760
    %v675 = vsub.f32 %v58, %v674
    %v676 = vand.u32 %v675, 4294901760
    %677 = vmatmul.mubr.f32.gmra.mrb[0].mxu0 %v676
    %v678 = vpop.f32.mrb[0].mxu0
    %v679 = vadd.f32 %v571, %v678
    %v680 = vpop.f32.mrb[0].mxu0
    %681 = vdwg.mxu0
    %682 = vmatprep.subr.mxu0 0.0
    %v683 = vand.u32 %v60, 4294901760
    %v684 = vsub.f32 %v60, %v683
    %v685 = vand.u32 %v684, 4294901760
    %686 = vmatpush1.msra.mxu0 %v685
    %687 = vmatprep.subr.mxu0 0.0
    %v688 = vand.u32 %v61, 4294901760
    %v689 = vsub.f32 %v61, %v688
    %v690 = vand.u32 %v689, 4294901760
    %691 = vmatpush1.msra.mxu0 %v690
    %692 = vmatprep.subr.mxu0 0.0
    %v693 = vand.u32 %v62, 4294901760
    %v694 = vsub.f32 %v62, %v693
    %v695 = vand.u32 %v694, 4294901760
    %696 = vmatpush1.msra.mxu0 %v695
    %697 = vmatprep.subr.mxu0 0.0
    %v698 = vand.u32 %v63, 4294901760
    %v699 = vsub.f32 %v63, %v698
    %v700 = vand.u32 %v699, 4294901760
    %701 = vmatpush1.msra.mxu0 %v700
    %702 = vmatprep.subr.mxu0 0.0
    %v703 = vand.u32 %v64, 4294901760
    %v704 = vsub.f32 %v64, %v703
    %v705 = vand.u32 %v704, 4294901760
    %706 = vmatpush1.msra.mxu0 %v705
    %707 = vmatprep.subr.mxu0 0.0
    %v708 = vand.u32 %v65, 4294901760
    %v709 = vsub.f32 %v65, %v708
    %v710 = vand.u32 %v709, 4294901760
    %711 = vmatpush1.msra.mxu0 %v710
    %712 = vmatprep.subr.mxu0 0.0
    %v713 = vand.u32 %v66, 4294901760
    %v714 = vsub.f32 %v66, %v713
    %v715 = vand.u32 %v714, 4294901760
    %716 = vmatpush1.msra.mxu0 %v715
    %717 = vmatprep.subr.mxu0 0.0
    %v718 = vand.u32 %v67, 4294901760
    %v719 = vsub.f32 %v67, %v718
    %v720 = vand.u32 %v719, 4294901760
    %721 = vmatpush1.msra.mxu0 %v720
    %722 = vmatprep.subr.mxu0 0.0
    %v723 = vand.u32 %v68, 4294901760
    %v724 = vsub.f32 %v68, %v723
    %v725 = vand.u32 %v724, 4294901760
    %726 = vmatpush1.msra.mxu0 %v725
    %727 = vmatprep.subr.mxu0 0.0
    %v728 = vand.u32 %v69, 4294901760
    %v729 = vsub.f32 %v69, %v728
    %v730 = vand.u32 %v729, 4294901760
    %731 = vmatpush1.msra.mxu0 %v730
    %732 = vmatprep.subr.mxu0 0.0
    %v733 = vand.u32 %v70, 4294901760
    %v734 = vsub.f32 %v70, %v733
    %v735 = vand.u32 %v734, 4294901760
    %736 = vmatpush1.msra.mxu0 %v735
    %737 = vmatprep.subr.mxu0 0.0
    %v738 = vand.u32 %v71, 4294901760
    %v739 = vsub.f32 %v71, %v738
    %v740 = vand.u32 %v739, 4294901760
    %741 = vmatpush1.msra.mxu0 %v740
    %742 = vmatprep.subr.mxu0 0.0
    %v743 = vand.u32 %v72, 4294901760
    %v744 = vsub.f32 %v72, %v743
    %v745 = vand.u32 %v744, 4294901760
    %746 = vmatpush1.msra.mxu0 %v745
    %747 = vmatprep.subr.mxu0 0.0
    %v748 = vand.u32 %v73, 4294901760
    %v749 = vsub.f32 %v73, %v748
    %v750 = vand.u32 %v749, 4294901760
    %751 = vmatpush1.msra.mxu0 %v750
    %752 = vmatprep.subr.mxu0 0.0
    %v753 = vand.u32 %v74, 4294901760
    %v754 = vsub.f32 %v74, %v753
    %v755 = vand.u32 %v754, 4294901760
    %756 = vmatpush1.msra.mxu0 %v755
    %757 = vmatprep.subr.mxu0 0.0
    %v758 = vand.u32 %v75, 4294901760
    %v759 = vsub.f32 %v75, %v758
    %v760 = vand.u32 %v759, 4294901760
    %761 = vmatpush1.msra.mxu0 %v760
    %762 = vmatprep.subr.mxu0 0.0
    %v763 = vand.u32 %v76, 4294901760
    %v764 = vsub.f32 %v76, %v763
    %v765 = vand.u32 %v764, 4294901760
    %766 = vmatpush1.msra.mxu0 %v765
    %767 = vmatprep.subr.mxu0 0.0
    %v768 = vand.u32 %v77, 4294901760
    %v769 = vsub.f32 %v77, %v768
    %v770 = vand.u32 %v769, 4294901760
    %771 = vmatpush1.msra.mxu0 %v770
    %772 = vmatprep.subr.mxu0 0.0
    %v773 = vand.u32 %v78, 4294901760
    %v774 = vsub.f32 %v78, %v773
    %v775 = vand.u32 %v774, 4294901760
    %776 = vmatpush1.msra.mxu0 %v775
    %777 = vmatprep.subr.mxu0 0.0
    %v778 = vand.u32 %v79, 4294901760
    %v779 = vsub.f32 %v79, %v778
    %v780 = vand.u32 %v779, 4294901760
    %781 = vmatpush1.msra.mxu0 %v780
    %782 = vmatprep.subr.mxu0 0.0
    %v783 = vand.u32 %v80, 4294901760
    %v784 = vsub.f32 %v80, %v783
    %v785 = vand.u32 %v784, 4294901760
    %786 = vmatpush1.msra.mxu0 %v785
    %787 = vmatprep.subr.mxu0 0.0
    %v788 = vand.u32 %v81, 4294901760
    %v789 = vsub.f32 %v81, %v788
    %v790 = vand.u32 %v789, 4294901760
    %791 = vmatpush1.msra.mxu0 %v790
    %792 = vmatprep.subr.mxu0 0.0
    %v793 = vand.u32 %v82, 4294901760
    %v794 = vsub.f32 %v82, %v793
    %v795 = vand.u32 %v794, 4294901760
    %796 = vmatpush1.msra.mxu0 %v795
    %797 = vmatprep.subr.mxu0 0.0
    %v798 = vand.u32 %v83, 4294901760
    %v799 = vsub.f32 %v83, %v798
    %v800 = vand.u32 %v799, 4294901760
    %801 = vmatpush1.msra.mxu0 %v800
    %802 = vmatprep.subr.mxu0 0.0
    %v803 = vand.u32 %v84, 4294901760
    %v804 = vsub.f32 %v84, %v803
    %v805 = vand.u32 %v804, 4294901760
    %806 = vmatpush1.msra.mxu0 %v805
    %807 = vmatprep.subr.mxu0 0.0
    %v808 = vand.u32 %v85, 4294901760
    %v809 = vsub.f32 %v85, %v808
    %v810 = vand.u32 %v809, 4294901760
    %811 = vmatpush1.msra.mxu0 %v810
    %812 = vmatprep.subr.mxu0 0.0
    %v813 = vand.u32 %v86, 4294901760
    %v814 = vsub.f32 %v86, %v813
    %v815 = vand.u32 %v814, 4294901760
    %816 = vmatpush1.msra.mxu0 %v815
    %817 = vmatprep.subr.mxu0 0.0
    %v818 = vand.u32 %v87, 4294901760
    %v819 = vsub.f32 %v87, %v818
    %v820 = vand.u32 %v819, 4294901760
    %821 = vmatpush1.msra.mxu0 %v820
    %822 = vmatprep.subr.mxu0 0.0
    %v823 = vand.u32 %v88, 4294901760
    %v824 = vsub.f32 %v88, %v823
    %v825 = vand.u32 %v824, 4294901760
    %826 = vmatpush1.msra.mxu0 %v825
    %827 = vmatprep.subr.mxu0 0.0
    %v828 = vand.u32 %v89, 4294901760
    %v829 = vsub.f32 %v89, %v828
    %v830 = vand.u32 %v829, 4294901760
    %831 = vmatpush1.msra.mxu0 %v830
    %832 = vmatprep.subr.mxu0 0.0
    %v833 = vand.u32 %v90, 4294901760
    %v834 = vsub.f32 %v90, %v833
    %v835 = vand.u32 %v834, 4294901760
    %836 = vmatpush1.msra.mxu0 %v835
    %837 = vmatprep.subr.mxu0 0.0
    %v838 = vand.u32 %v91, 4294901760
    %v839 = vsub.f32 %v91, %v838
    %v840 = vand.u32 %v839, 4294901760
    %841 = vmatpush1.msra.mxu0 %v840
    %v842 = vand.u32 %v59, 4294901760
    %843 = vmatprep.mubr.f32.mxu0 %v842
    %v844 = vand.u32 %v58, 4294901760
    %845 = vmatmul.mubr.f32.gmra.mrb[0].mxu0 %v844
    %v846 = vpop.f32.mrb[0].mxu0
    %v847 = vadd.f32 %v679, %v846
    %v848 = vpop.f32.mrb[0].mxu0
    %849 = vdwg.mxu0
    %850 = vmatprep.subr.mxu0 0.0
    %v851 = vand.u32 %v60, 4294901760
    %852 = vmatpush1.msra.mxu0 %v851
    %853 = vmatprep.subr.mxu0 0.0
    %v854 = vand.u32 %v61, 4294901760
    %855 = vmatpush1.msra.mxu0 %v854
    %856 = vmatprep.subr.mxu0 0.0
    %v857 = vand.u32 %v62, 4294901760
    %858 = vmatpush1.msra.mxu0 %v857
    %859 = vmatprep.subr.mxu0 0.0
    %v860 = vand.u32 %v63, 4294901760
    %861 = vmatpush1.msra.mxu0 %v860
    %862 = vmatprep.subr.mxu0 0.0
    %v863 = vand.u32 %v64, 4294901760
    %864 = vmatpush1.msra.mxu0 %v863
    %865 = vmatprep.subr.mxu0 0.0
    %v866 = vand.u32 %v65, 4294901760
    %867 = vmatpush1.msra.mxu0 %v866
    %868 = vmatprep.subr.mxu0 0.0
    %v869 = vand.u32 %v66, 4294901760
    %870 = vmatpush1.msra.mxu0 %v869
    %871 = vmatprep.subr.mxu0 0.0
    %v872 = vand.u32 %v67, 4294901760
    %873 = vmatpush1.msra.mxu0 %v872
    %874 = vmatprep.subr.mxu0 0.0
    %v875 = vand.u32 %v68, 4294901760
    %876 = vmatpush1.msra.mxu0 %v875
    %877 = vmatprep.subr.mxu0 0.0
    %v878 = vand.u32 %v69, 4294901760
    %879 = vmatpush1.msra.mxu0 %v878
    %880 = vmatprep.subr.mxu0 0.0
    %v881 = vand.u32 %v70, 4294901760
    %882 = vmatpush1.msra.mxu0 %v881
    %883 = vmatprep.subr.mxu0 0.0
    %v884 = vand.u32 %v71, 4294901760
    %885 = vmatpush1.msra.mxu0 %v884
    %886 = vmatprep.subr.mxu0 0.0
    %v887 = vand.u32 %v72, 4294901760
    %888 = vmatpush1.msra.mxu0 %v887
    %889 = vmatprep.subr.mxu0 0.0
    %v890 = vand.u32 %v73, 4294901760
    %891 = vmatpush1.msra.mxu0 %v890
    %892 = vmatprep.subr.mxu0 0.0
    %v893 = vand.u32 %v74, 4294901760
    %894 = vmatpush1.msra.mxu0 %v893
    %895 = vmatprep.subr.mxu0 0.0
    %v896 = vand.u32 %v75, 4294901760
    %897 = vmatpush1.msra.mxu0 %v896
    %898 = vmatprep.subr.mxu0 0.0
    %v899 = vand.u32 %v76, 4294901760
    %900 = vmatpush1.msra.mxu0 %v899
    %901 = vmatprep.subr.mxu0 0.0
    %v902 = vand.u32 %v77, 4294901760
    %903 = vmatpush1.msra.mxu0 %v902
    %904 = vmatprep.subr.mxu0 0.0
    %v905 = vand.u32 %v78, 4294901760
    %906 = vmatpush1.msra.mxu0 %v905
    %907 = vmatprep.subr.mxu0 0.0
    %v908 = vand.u32 %v79, 4294901760
    %909 = vmatpush1.msra.mxu0 %v908
    %910 = vmatprep.subr.mxu0 0.0
    %v911 = vand.u32 %v80, 4294901760
    %912 = vmatpush1.msra.mxu0 %v911
    %913 = vmatprep.subr.mxu0 0.0
    %v914 = vand.u32 %v81, 4294901760
    %915 = vmatpush1.msra.mxu0 %v914
    %916 = vmatprep.subr.mxu0 0.0
    %v917 = vand.u32 %v82, 4294901760
    %918 = vmatpush1.msra.mxu0 %v917
    %919 = vmatprep.subr.mxu0 0.0
    %v920 = vand.u32 %v83, 4294901760
    %921 = vmatpush1.msra.mxu0 %v920
    %922 = vmatprep.subr.mxu0 0.0
    %v923 = vand.u32 %v84, 4294901760
    %924 = vmatpush1.msra.mxu0 %v923
    %925 = vmatprep.subr.mxu0 0.0
    %v926 = vand.u32 %v85, 4294901760
    %927 = vmatpush1.msra.mxu0 %v926
    %928 = vmatprep.subr.mxu0 0.0
    %v929 = vand.u32 %v86, 4294901760
    %930 = vmatpush1.msra.mxu0 %v929
    %931 = vmatprep.subr.mxu0 0.0
    %v932 = vand.u32 %v87, 4294901760
    %933 = vmatpush1.msra.mxu0 %v932
    %934 = vmatprep.subr.mxu0 0.0
    %v935 = vand.u32 %v88, 4294901760
    %936 = vmatpush1.msra.mxu0 %v935
    %937 = vmatprep.subr.mxu0 0.0
    %v938 = vand.u32 %v89, 4294901760
    %939 = vmatpush1.msra.mxu0 %v938
    %940 = vmatprep.subr.mxu0 0.0
    %v941 = vand.u32 %v90, 4294901760
    %942 = vmatpush1.msra.mxu0 %v941
    %943 = vmatprep.subr.mxu0 0.0
    %v944 = vand.u32 %v91, 4294901760
    %945 = vmatpush1.msra.mxu0 %v944
    %v946 = vand.u32 %v59, 4294901760
    %947 = vmatprep.mubr.f32.mxu0 %v946
    %v948 = vand.u32 %v58, 4294901760
    %949 = vmatmul.mubr.f32.gmra.mrb[0].mxu0 %v948
    %v950 = vpop.f32.mrb[0].mxu0
    %v951 = vadd.f32 %v847, %v950
    %v952 = vpop.f32.mrb[0].mxu0
    %953 = vdwg.mxu0
    %954 = vst [vmem:[#allocation5] sm:$0xff] %v951
    // Predicated region
    $region14: #{tpu_custom_call.1} parent=1 // pred_check
      _
    $region15: #{tpu_custom_call.1} parent=1 // pred_check_branch
      %956 = sbr.rel (0) target = $region17
    $region16: #{tpu_custom_call.1} parent=1 // pred_region
      %s958 = ssub.s32 128, 128
      %959 = vsyncadd [#allocation4], %s958
      %s961 = sshll.u32 [#allocation5], 4
      %s962 = int_to_ptr.vmem [resolvable:$true] %s961
      %964 = dma.vmem_to_hbm [thread:$0]  %s962, 128, %s2, [#allocation4]
    $region17: #{tpu_custom_call.1} parent=1 // pred_fallthru
      _
    // Predicated region
    $region18: #{tpu_custom_call.1} parent=1 // pred_check
      _
    $region19: #{tpu_custom_call.1} parent=1 // pred_check_branch
      %966 = sbr.rel (0) target = $region21
    $region20: #{tpu_custom_call.1} parent=1 // pred_region
      %967 = dma.done [#allocation4], 128
    $region21: #{tpu_custom_call.1} parent=1 // pred_fallthru
      _
    %968 = vsyncpa [#allocation3], 1
    %969 = vsyncpa [#allocation4], 1

// kernel: tpu_custom_call.1
$region0: #{tpu_custom_call.1}
  #allocation0 [shape = 'u32[]', space=smem, size = 0x4, offset = 0x4, fixed_abs, tag = 'smem constant byte address 0x4 - core index']
  #allocation1 [shape = 'u32[144,128]{1,0:T(1,128)}', space=vmem, size = 0x12000, scoped, tag = 'internal scratch']
  %s0 = inlined_call_operand.vmem [shape: s32[8,4], index: 0, kind: input, shape index: {}]
  %s1 = inlined_call_operand.hbm [shape: f32[256,128], index: 1, kind: input, shape index: {}]
  %s2 = inlined_call_operand.hbm [shape: f32[8,128], index: 2, kind: output, shape index: {}]
  %s3 = sld [smem:[#allocation0]]
  $region22: #{tpu_custom_call.1} parent=0
    _
  %s5 = ssub.s32 1, %s3
  %s6 = scalar_select 0, %s5, %s3
  $region1: #{tpu_custom_call.1} parent=0
    #allocation2 [shape = 'u8[131072]{0}', space=vmem, size = 0x20000, scoped, tag = 'input window, operand 1, single buffered']
    #allocation3 [shape = 's32[1]{0}', space=sflag, size = 0x4, scoped, tag = 'scoped memory for tpu_custom_call.1']
    #allocation4 [shape = 's32[1]{0}', space=sflag, size = 0x4, scoped, tag = 'scoped memory for tpu_custom_call.1']
    #allocation5 [shape = 'u8[4096]{0}', space=vmem, size = 0x1000, scoped, tag = 'output window, operand 0, single buffered']
    %7 = vsyncpa [#allocation3], 0
    %8 = vsyncpa [#allocation4], 0
    // Predicated region
    $region2: #{tpu_custom_call.1} parent=1 // pred_check
      _
    $region3: #{tpu_custom_call.1} parent=1 // pred_check_branch
      %10 = sbr.rel (0) target = $region5
    $region4: #{tpu_custom_call.1} parent=1 // pred_region
      _
    $region5: #{tpu_custom_call.1} parent=1 // pred_fallthru
      _
    // Predicated region
    $region6: #{tpu_custom_call.1} parent=1 // pred_check
      _
    $region7: #{tpu_custom_call.1} parent=1 // pred_check_branch
      %12 = sbr.rel (0) target = $region9
    $region8: #{tpu_custom_call.1} parent=1 // pred_region
      %s14 = ssub.s32 4096, 4096
      %15 = vsyncadd [#allocation3], %s14
      %s16 = sshll.u32 [#allocation2], 4
      %s17 = int_to_ptr.vmem [resolvable:$true] %s16
      %22 = dma.hbm_to_vmem [thread:$0]  %s1, 4096, %s17, [#allocation3], 128, 128, 8
    $region9: #{tpu_custom_call.1} parent=1 // pred_fallthru
      _
    // Predicated region
    $region10: #{tpu_custom_call.1} parent=1 // pred_check
      _
    $region11: #{tpu_custom_call.1} parent=1 // pred_check_branch
      %24 = sbr.rel (0) target = $region13
    $region12: #{tpu_custom_call.1} parent=1 // pred_region
      %25 = dma.done [#allocation3], 4096
    $region13: #{tpu_custom_call.1} parent=1 // pred_fallthru
      _
    %v26 = vld [vmem:[%s0] sm:$0xff]
    %v27 = vlaneseq
    %v28 = vand.u32 %v27, 127
    %v29 = vadd.s32 %v28, 128
    %30 = vset.pattern.permute.xlu0 0
    %31 = vperm.xlu0 %30, %v26
    %v32 = vpop.permute.xlu0 %31
    %vm33 = vcmp.eq.s32.totalorder %v32, %v28
    %vm34 = vcmp.eq.s32.totalorder %v32, %v29
    %35 = vset.pattern.permute.xlu0 1
    %36 = vperm.xlu0 %35, %v26
    %v37 = vpop.permute.xlu0 %36
    %vm38 = vcmp.eq.s32.totalorder %v37, %v28
    %vm39 = vcmp.eq.s32.totalorder %v37, %v29
    %vm40 = vmor %vm33, %vm38
    %vm41 = vmor %vm34, %vm39
    %42 = vset.pattern.permute.xlu0 2
    %43 = vperm.xlu0 %42, %v26
    %v44 = vpop.permute.xlu0 %43
    %vm45 = vcmp.eq.s32.totalorder %v44, %v28
    %vm46 = vcmp.eq.s32.totalorder %v44, %v29
    %vm47 = vmor %vm40, %vm45
    %vm48 = vmor %vm41, %vm46
    %49 = vset.pattern.permute.xlu0 3
    %50 = vperm.xlu0 %49, %v26
    %v51 = vpop.permute.xlu0 %50
    %vm52 = vcmp.eq.s32.totalorder %v51, %v28
    %vm53 = vcmp.eq.s32.totalorder %v51, %v29
    %vm54 = vmor %vm47, %vm52
    %vm55 = vmor %vm48, %vm53
    %v56 = vsel %vm54, 1, 0
    %v57 = vsel %vm55, 1, 0
    %v58 = vcvt.s32.f32 %v56
    %v59 = vcvt.s32.f32 %v57
    %v60 = vld [vmem:[#allocation2] sm:$0xff]
    %v61 = vld [vmem:[#allocation2 + $0x8] sm:$0xff]
    %v62 = vld [vmem:[#allocation2 + $0x10] sm:$0xff]
    %v63 = vld [vmem:[#allocation2 + $0x18] sm:$0xff]
    %v64 = vld [vmem:[#allocation2 + $0x20] sm:$0xff]
    %v65 = vld [vmem:[#allocation2 + $0x28] sm:$0xff]
    %v66 = vld [vmem:[#allocation2 + $0x30] sm:$0xff]
    %v67 = vld [vmem:[#allocation2 + $0x38] sm:$0xff]
    %v68 = vld [vmem:[#allocation2 + $0x40] sm:$0xff]
    %v69 = vld [vmem:[#allocation2 + $0x48] sm:$0xff]
    %v70 = vld [vmem:[#allocation2 + $0x50] sm:$0xff]
    %v71 = vld [vmem:[#allocation2 + $0x58] sm:$0xff]
    %v72 = vld [vmem:[#allocation2 + $0x60] sm:$0xff]
    %v73 = vld [vmem:[#allocation2 + $0x68] sm:$0xff]
    %v74 = vld [vmem:[#allocation2 + $0x70] sm:$0xff]
    %v75 = vld [vmem:[#allocation2 + $0x78] sm:$0xff]
    %v76 = vld [vmem:[#allocation2 + $0x80] sm:$0xff]
    %v77 = vld [vmem:[#allocation2 + $0x88] sm:$0xff]
    %v78 = vld [vmem:[#allocation2 + $0x90] sm:$0xff]
    %v79 = vld [vmem:[#allocation2 + $0x98] sm:$0xff]
    %v80 = vld [vmem:[#allocation2 + $0xa0] sm:$0xff]
    %v81 = vld [vmem:[#allocation2 + $0xa8] sm:$0xff]
    %v82 = vld [vmem:[#allocation2 + $0xb0] sm:$0xff]
    %v83 = vld [vmem:[#allocation2 + $0xb8] sm:$0xff]
    %v84 = vld [vmem:[#allocation2 + $0xc0] sm:$0xff]
    %v85 = vld [vmem:[#allocation2 + $0xc8] sm:$0xff]
    %v86 = vld [vmem:[#allocation2 + $0xd0] sm:$0xff]
    %v87 = vld [vmem:[#allocation2 + $0xd8] sm:$0xff]
    %v88 = vld [vmem:[#allocation2 + $0xe0] sm:$0xff]
    %v89 = vld [vmem:[#allocation2 + $0xe8] sm:$0xff]
    %v90 = vld [vmem:[#allocation2 + $0xf0] sm:$0xff]
    %v91 = vld [vmem:[#allocation2 + $0xf8] sm:$0xff]
    %92 = vmatprep.subr.mxu0 0.0
    %93 = vmatpush1.msra.mxu0 %v60
    %94 = vmatprep.subr.mxu0 0.0
    %95 = vmatpush1.msra.mxu0 %v61
    %96 = vmatprep.subr.mxu0 0.0
    %97 = vmatpush1.msra.mxu0 %v62
    %98 = vmatprep.subr.mxu0 0.0
    %99 = vmatpush1.msra.mxu0 %v63
    %100 = vmatprep.subr.mxu0 0.0
    %101 = vmatpush1.msra.mxu0 %v64
    %102 = vmatprep.subr.mxu0 0.0
    %103 = vmatpush1.msra.mxu0 %v65
    %104 = vmatprep.subr.mxu0 0.0
    %105 = vmatpush1.msra.mxu0 %v66
    %106 = vmatprep.subr.mxu0 0.0
    %107 = vmatpush1.msra.mxu0 %v67
    %108 = vmatprep.subr.mxu0 0.0
    %109 = vmatpush1.msra.mxu0 %v68
    %110 = vmatprep.subr.mxu0 0.0
    %111 = vmatpush1.msra.mxu0 %v69
    %112 = vmatprep.subr.mxu0 0.0
    %113 = vmatpush1.msra.mxu0 %v70
    %114 = vmatprep.subr.mxu0 0.0
    %115 = vmatpush1.msra.mxu0 %v71
    %116 = vmatprep.subr.mxu0 0.0
    %117 = vmatpush1.msra.mxu0 %v72
    %118 = vmatprep.subr.mxu0 0.0
    %119 = vmatpush1.msra.mxu0 %v73
    %120 = vmatprep.subr.mxu0 0.0
    %121 = vmatpush1.msra.mxu0 %v74
    %122 = vmatprep.subr.mxu0 0.0
    %123 = vmatpush1.msra.mxu0 %v75
    %124 = vmatprep.subr.mxu0 0.0
    %125 = vmatpush1.msra.mxu0 %v76
    %126 = vmatprep.subr.mxu0 0.0
    %127 = vmatpush1.msra.mxu0 %v77
    %128 = vmatprep.subr.mxu0 0.0
    %129 = vmatpush1.msra.mxu0 %v78
    %130 = vmatprep.subr.mxu0 0.0
    %131 = vmatpush1.msra.mxu0 %v79
    %132 = vmatprep.subr.mxu0 0.0
    %133 = vmatpush1.msra.mxu0 %v80
    %134 = vmatprep.subr.mxu0 0.0
    %135 = vmatpush1.msra.mxu0 %v81
    %136 = vmatprep.subr.mxu0 0.0
    %137 = vmatpush1.msra.mxu0 %v82
    %138 = vmatprep.subr.mxu0 0.0
    %139 = vmatpush1.msra.mxu0 %v83
    %140 = vmatprep.subr.mxu0 0.0
    %141 = vmatpush1.msra.mxu0 %v84
    %142 = vmatprep.subr.mxu0 0.0
    %143 = vmatpush1.msra.mxu0 %v85
    %144 = vmatprep.subr.mxu0 0.0
    %145 = vmatpush1.msra.mxu0 %v86
    %146 = vmatprep.subr.mxu0 0.0
    %147 = vmatpush1.msra.mxu0 %v87
    %148 = vmatprep.subr.mxu0 0.0
    %149 = vmatpush1.msra.mxu0 %v88
    %150 = vmatprep.subr.mxu0 0.0
    %151 = vmatpush1.msra.mxu0 %v89
    %152 = vmatprep.subr.mxu0 0.0
    %153 = vmatpush1.msra.mxu0 %v90
    %154 = vmatprep.subr.mxu0 0.0
    %155 = vmatpush1.msra.mxu0 %v91
    %156 = vmatprep.mubr.f32.mxu0 %v59
    %157 = vmatmul.mubr.f32.gmra.mrb[0].mxu0 %v58
    %v158 = vpop.f32.mrb[0].mxu0
    %v159 = vadd.f32 0.0, %v158
    %v160 = vpop.f32.mrb[0].mxu0
    %161 = vdwg.mxu0
    %162 = vst [vmem:[#allocation5] sm:$0xff] %v159
    // Predicated region
    $region14: #{tpu_custom_call.1} parent=1 // pred_check
      _
    $region15: #{tpu_custom_call.1} parent=1 // pred_check_branch
      %164 = sbr.rel (0) target = $region17
    $region16: #{tpu_custom_call.1} parent=1 // pred_region
      %s166 = ssub.s32 128, 128
      %167 = vsyncadd [#allocation4], %s166
      %s169 = sshll.u32 [#allocation5], 4
      %s170 = int_to_ptr.vmem [resolvable:$true] %s169
      %172 = dma.vmem_to_hbm [thread:$0]  %s170, 128, %s2, [#allocation4]
    $region17: #{tpu_custom_call.1} parent=1 // pred_fallthru
      _
    // Predicated region
    $region18: #{tpu_custom_call.1} parent=1 // pred_check
      _
    $region19: #{tpu_custom_call.1} parent=1 // pred_check_branch
      %174 = sbr.rel (0) target = $region21
    $region20: #{tpu_custom_call.1} parent=1 // pred_region
      %175 = dma.done [#allocation4], 128
    $region21: #{tpu_custom_call.1} parent=1 // pred_fallthru
      _
    %176 = vsyncpa [#allocation3], 1
    %177 = vsyncpa [#allocation4], 1

</llo_original>
